<compile_context>
chip_gen: v7x
topology: tpu7x:2x2x1
jax: 0.10.0
libtpu: 0.0.40
codegen_flags: <defaults>
</compile_context>

<pallas_src>
import functools

import jax
import jax.numpy as jnp
from jax.experimental import pallas as pl
from jax.experimental.pallas import tpu as pltpu

# encoder dims: 784 -> 128 -> 64 -> 12 -> 3 ; decoder dims: 3 -> 12 -> 64 -> 128 -> 784
ENC_DIMS = [28 * 28, 128, 64, 12, 3]
DEC_DIMS = [3, 12, 64, 128, 28 * 28]

# Layer sequence as seen by the kernel after folding enc4(12->3) ∘ dec1(3->12) into a
# single 12->12 matmul for the decode path (the 12->3 layer is kept for the enc output).
KERNEL_LAYERS = [
    (784, 128),  # enc1, tanh
    (128, 64),   # enc2, tanh
    (64, 12),    # enc3, tanh
    (12, 3),     # enc4, no act  -> encoded output
    (12, 12),    # fused enc4∘dec1, tanh (decode entry)
    (12, 64),    # dec2, tanh
    (64, 128),   # dec3, tanh
    (128, 784),  # dec4, sigmoid
]
MAX_OUT = 28 * 28  # lane width of the packed weight / bias blobs


def _round_up(n, m):
    return ((n + m - 1) // m) * m


# Static row offsets of each weight segment in the packed bf16 blob. Every segment's
# row count is padded to a multiple of 16 so bf16 (16,128) sublane tiling stays aligned.
W_ROW_OFFSETS = []
_off = 0
for _in, _out in KERNEL_LAYERS:
    W_ROW_OFFSETS.append(_off)
    _off += _round_up(_in, 16)
W_BLOB_ROWS = _off  # 1216

# 512 fills the MXU M-axis twice on v6e/v7x and keeps blocks (bf16 x/dec ~0.8 MiB each,
# double-buffered) + the ~1.9 MiB weight blob far below the 48 MiB scoped VMEM limit.
DEFAULT_TILE_B = 512


def autoencoder_kernel(x_ref, w_ref, b_ref, enc_ref, dec_ref):
    # x arrives in its producer dtype (bf16 preferred); cast once for the MXU.
    h = x_ref[...].astype(jnp.bfloat16)

    def layer(h_in, li, act):
        in_dim, out_dim = KERNEL_LAYERS[li]
        off = W_ROW_OFFSETS[li]
        w = w_ref[off:off + in_dim, :out_dim]        # bf16 (in, out), static view
        b = b_ref[li:li + 1, :out_dim]               # f32  (1, out)
        y = jnp.dot(h_in, w, preferred_element_type=jnp.float32) + b
        if act == "tanh":
            y = jnp.tanh(y)
        elif act == "sigmoid":
            # sigmoid(x) == 0.5 * (tanh(0.5 * x) + 1): one EUP op per element on the
            # widest (784-lane) layer instead of exp + divide.
            y = 0.5 * (jnp.tanh(0.5 * y) + 1.0)
        return y

    # ---- encoder trunk: 3x (Linear -> Tanh) ----
    h = layer(h, 0, "tanh").astype(jnp.bfloat16)
    h = layer(h, 1, "tanh").astype(jnp.bfloat16)
    h12 = layer(h, 2, "tanh").astype(jnp.bfloat16)

    # ---- encoder head (12 -> 3, no activation) -> encoded output ----
    enc_ref[...] = layer(h12, 3, None).astype(enc_ref.dtype)

    # ---- decoder: fused 12->12 entry (exact algebra), then 12->64->128->784 ----
    h = layer(h12, 4, "tanh").astype(jnp.bfloat16)
    h = layer(h, 5, "tanh").astype(jnp.bfloat16)
    h = layer(h, 6, "tanh").astype(jnp.bfloat16)
    dec_ref[...] = layer(h, 7, "sigmoid").astype(dec_ref.dtype)


def init_params(key):
    """Deterministic init mimicking PyTorch nn.Linear default (uniform +-1/sqrt(in))."""
    params = []  # list of (w_T (in,out), b (1,out)), f32, module order enc1..enc4,dec1..dec4
    for dims in (ENC_DIMS, DEC_DIMS):
        for i in range(len(dims) - 1):
            fan_in, fan_out = dims[i], dims[i + 1]
            key, kw, kb = jax.random.split(key, 3)
            bound = 1.0 / jnp.sqrt(jnp.float32(fan_in))
            w_t = jax.random.uniform(kw, (fan_in, fan_out), jnp.float32, -bound, bound)
            b = jax.random.uniform(kb, (1, fan_out), jnp.float32, -bound, bound)
            params.append((w_t, b))
    return params


def pack_params(params):
    """Fold enc4∘dec1 and pack the 8 layers into a bf16 weight blob + f32 bias blob."""
    (we1, be1), (we2, be2), (we3, be3), (we4, be4) = params[:4]
    (wd1, bd1), (wd2, bd2), (wd3, bd3), (wd4, bd4) = params[4:]

    # Exact fold (no activation between enc4 and dec1), computed in f32.
    w45 = we4 @ wd1                 # (12, 3) @ (3, 12) -> (12, 12)
    b45 = be4 @ wd1 + bd1           # (1, 12)

    kernel_params = [(we1, be1), (we2, be2), (we3, be3), (we4, be4),
                     (w45, b45), (wd2, bd2), (wd3, bd3), (wd4, bd4)]

    w_blob = jnp.zeros((W_BLOB_ROWS, MAX_OUT), jnp.bfloat16)
    b_blob = jnp.zeros((len(KERNEL_LAYERS), MAX_OUT), jnp.float32)
    for li, (w, b) in enumerate(kernel_params):
        in_dim, out_dim = KERNEL_LAYERS[li]
        off = W_ROW_OFFSETS[li]
        w_blob = w_blob.at[off:off + in_dim, :out_dim].set(w.astype(jnp.bfloat16))
        b_blob = b_blob.at[li, :out_dim].set(b[0].astype(jnp.float32))
    return w_blob, b_blob


@functools.partial(jax.jit, static_argnames=("tile_b",))
def autoencoder_forward(x, w_blob, b_blob, tile_b=DEFAULT_TILE_B):
    B, _ = x.shape

    # Balanced batch tiles: >=2 grid steps (feeds both v7x TensorCores) whenever B allows,
    # tile rounded to a sublane multiple so padding is capped at <8 rows for any B.
    n_tiles = max(pl.cdiv(B, tile_b), 2) if B > 8 else 1
    tb = _round_up(pl.cdiv(B, n_tiles), 8)
    b_pad = tb * n_tiles
    if b_pad != B:
        x = jnp.pad(x, ((0, b_pad - B), (0, 0)))
    grid = (n_tiles,)

    # Decoded output follows the producer dtype (bf16 in -> bf16 out halves HBM traffic);
    # the tiny (B, 3) encoded output stays f32.
    dec_dtype = x.dtype

    # Advisory cost estimate for XLA scheduling.
    flops = b_pad * sum(2 * i * o for i, o in KERNEL_LAYERS)
    transcendentals = b_pad * (128 + 64 + 12 + 12 + 64 + 128 + 784)
    bytes_accessed = (b_pad * 784 * x.dtype.itemsize
                      + b_pad * 784 * jnp.dtype(dec_dtype).itemsize
                      + b_pad * 3 * 4
                      + int(w_blob.size) * 2 + int(b_blob.size) * 4)
    cost = pl.CostEstimate(flops=int(flops), transcendentals=int(transcendentals),
                           bytes_accessed=int(bytes_accessed))

    enc_out, dec_out = pl.pallas_call(
        autoencoder_kernel,
        out_shape=(
            jax.ShapeDtypeStruct((b_pad, ENC_DIMS[-1]), jnp.float32),
            jax.ShapeDtypeStruct((b_pad, DEC_DIMS[-1]), dec_dtype),
        ),
        grid=grid,
        in_specs=[
            pl.BlockSpec((tb, ENC_DIMS[0]), lambda i: (i, 0)),      # pipelined x tiles
            pl.BlockSpec(w_blob.shape, lambda i: (0, 0)),           # VMEM-resident weights
            pl.BlockSpec(b_blob.shape, lambda i: (0, 0)),           # VMEM-resident biases
        ],
        out_specs=(
            pl.BlockSpec((tb, ENC_DIMS[-1]), lambda i: (i, 0)),
            pl.BlockSpec((tb, DEC_DIMS[-1]), lambda i: (i, 0)),
        ),
        compiler_params=pltpu.CompilerParams(
            dimension_semantics=("parallel",),
            # Raises v5e's 16 MiB scoped default; safely under v7x's 64 MiB physical VMEM.
            vmem_limit_bytes=48 * 1024 * 1024,
        ),
        cost_estimate=cost,
    )(x, w_blob, b_blob)

    return enc_out[:B], dec_out[:B]


def reference_forward(x, params):
    """Pure-JAX f32 reference matching the PyTorch module (unfused params)."""
    h = x
    for li in range(4):
        w, b = params[li]
        h = h @ w + b
        if li < 3:
            h = jnp.tanh(h)
    enc = h
    h = enc
    for li in range(4):
        w, b = params[4 + li]
        h = h @ w + b
        h = jnp.tanh(h) if li < 3 else jax.nn.sigmoid(h)
    return enc, h


if __name__ == "__main__":
    key = jax.random.PRNGKey(0)
    k_x, k_p = jax.random.split(key)

    B = 16
    # Producer supplies bf16 input (MNIST-like flattened pixels in [0,1]).
    x = jax.random.uniform(k_x, (B, 28 * 28), jnp.bfloat16)
    params = init_params(k_p)
    w_blob, b_blob = pack_params(params)

    enc, dec = autoencoder_forward(x, w_blob, b_blob)
    jax.block_until_ready((enc, dec))

    enc_ref, dec_ref = reference_forward(x.astype(jnp.float32), params)
    assert enc.shape == (B, 3) and dec.shape == (B, 784)
    # Tolerance loosened vs the pure-f32 path: matmul operands, input and decoded output
    # are bf16 (f32 accumulation throughout).
    assert jnp.allclose(enc, enc_ref, atol=5e-2, rtol=5e-2), \
        float(jnp.max(jnp.abs(enc - enc_ref)))
    assert jnp.allclose(dec.astype(jnp.float32), dec_ref, atol=5e-2, rtol=5e-2), \
        float(jnp.max(jnp.abs(dec.astype(jnp.float32) - dec_ref)))

    print("KERNEL_OK")
</pallas_src>

<mosaic_0001>
module attributes {stable_mosaic.version = 11 : i64} {
  func.func @autoencoder_kernel(%arg0: i32, %arg1: memref<8x784xbf16, #tpu.memory_space<vmem>>, %arg2: memref<1216x784xbf16, #tpu.memory_space<vmem>>, %arg3: memref<8x784xf32, #tpu.memory_space<vmem>>, %arg4: memref<8x3xf32, #tpu.memory_space<vmem>>, %arg5: memref<8x784xbf16, #tpu.memory_space<vmem>>) attributes {dimension_semantics = [#tpu.dimension_semantics<parallel>], iteration_bounds = array<i64: 2>, scalar_prefetch = 0 : i64, scratch_operands = 0 : i64, tpu.core_type = #tpu.core_type<tc>, window_params = [{transform_indices = @transform_0, window_bounds = array<i64: 8, 784>}, {pipeline_mode = #tpu.pipeline_mode<synchronous>, transform_indices = @transform_1, window_bounds = array<i64: 1216, 784>}, {pipeline_mode = #tpu.pipeline_mode<synchronous>, transform_indices = @transform_2, window_bounds = array<i64: 8, 784>}, {transform_indices = @transform_3, window_bounds = array<i64: 8, 3>}, {transform_indices = @transform_4, window_bounds = array<i64: 8, 784>}]} {
    %c0 = arith.constant 0 : index
    %c0_0 = arith.constant 0 : index
    %0 = vector.load %arg1[%c0, %c0_0] : memref<8x784xbf16, #tpu.memory_space<vmem>>, vector<8x784xbf16>
    %c0_1 = arith.constant 0 : index
    %c0_2 = arith.constant 0 : index
    %1 = vector.load %arg2[%c0_1, %c0_2] : memref<1216x784xbf16, #tpu.memory_space<vmem>>, vector<784x128xbf16>
    %c0_3 = arith.constant 0 : index
    %c0_4 = arith.constant 0 : index
    %2 = vector.load %arg3[%c0_3, %c0_4] : memref<8x784xf32, #tpu.memory_space<vmem>>, vector<1x128xf32>
    %cst = arith.constant dense<0.000000e+00> : vector<8x128xf32>
    %3 = tpu.matmul %0, %1, %cst {dimension_numbers = #tpu.dot_dimension_numbers<[1], [0], [0], [1], [0, 0, 1, 1], [], []>} : vector<8x784xbf16>, vector<784x128xbf16>, vector<8x128xf32> -> vector<8x128xf32>
    %4 = vector.broadcast %2 : vector<1x128xf32> to vector<8x128xf32>
    %5 = arith.addf %3, %4 : vector<8x128xf32>
    %6 = math.tanh %5 : vector<8x128xf32>
    %7 = arith.truncf %6 : vector<8x128xf32> to vector<8x128xbf16>
    %c784 = arith.constant 784 : index
    %c0_5 = arith.constant 0 : index
    %8 = vector.load %arg2[%c784, %c0_5] : memref<1216x784xbf16, #tpu.memory_space<vmem>>, vector<128x64xbf16>
    %c1 = arith.constant 1 : index
    %c0_6 = arith.constant 0 : index
    %9 = vector.load %arg3[%c1, %c0_6] : memref<8x784xf32, #tpu.memory_space<vmem>>, vector<1x64xf32>
    %cst_7 = arith.constant dense<0.000000e+00> : vector<8x64xf32>
    %10 = tpu.matmul %7, %8, %cst_7 {dimension_numbers = #tpu.dot_dimension_numbers<[1], [0], [0], [1], [0, 0, 1, 1], [], []>} : vector<8x128xbf16>, vector<128x64xbf16>, vector<8x64xf32> -> vector<8x64xf32>
    %11 = vector.broadcast %9 : vector<1x64xf32> to vector<8x64xf32>
    %12 = arith.addf %10, %11 : vector<8x64xf32>
    %13 = math.tanh %12 : vector<8x64xf32>
    %14 = arith.truncf %13 : vector<8x64xf32> to vector<8x64xbf16>
    %c912 = arith.constant 912 : index
    %c0_8 = arith.constant 0 : index
    %15 = vector.load %arg2[%c912, %c0_8] : memref<1216x784xbf16, #tpu.memory_space<vmem>>, vector<64x12xbf16>
    %c2 = arith.constant 2 : index
    %c0_9 = arith.constant 0 : index
    %16 = vector.load %arg3[%c2, %c0_9] : memref<8x784xf32, #tpu.memory_space<vmem>>, vector<1x12xf32>
    %cst_10 = arith.constant dense<0.000000e+00> : vector<8x12xf32>
    %17 = tpu.matmul %14, %15, %cst_10 {dimension_numbers = #tpu.dot_dimension_numbers<[1], [0], [0], [1], [0, 0, 1, 1], [], []>} : vector<8x64xbf16>, vector<64x12xbf16>, vector<8x12xf32> -> vector<8x12xf32>
    %18 = vector.broadcast %16 : vector<1x12xf32> to vector<8x12xf32>
    %19 = arith.addf %17, %18 : vector<8x12xf32>
    %20 = math.tanh %19 : vector<8x12xf32>
    %21 = arith.truncf %20 : vector<8x12xf32> to vector<8x12xbf16>
    %c976 = arith.constant 976 : index
    %c0_11 = arith.constant 0 : index
    %22 = vector.load %arg2[%c976, %c0_11] : memref<1216x784xbf16, #tpu.memory_space<vmem>>, vector<12x3xbf16>
    %c3 = arith.constant 3 : index
    %c0_12 = arith.constant 0 : index
    %23 = vector.load %arg3[%c3, %c0_12] : memref<8x784xf32, #tpu.memory_space<vmem>>, vector<1x3xf32>
    %cst_13 = arith.constant dense<0.000000e+00> : vector<8x3xf32>
    %24 = tpu.matmul %21, %22, %cst_13 {dimension_numbers = #tpu.dot_dimension_numbers<[1], [0], [0], [1], [0, 0, 1, 1], [], []>} : vector<8x12xbf16>, vector<12x3xbf16>, vector<8x3xf32> -> vector<8x3xf32>
    %25 = vector.broadcast %23 : vector<1x3xf32> to vector<8x3xf32>
    %26 = arith.addf %24, %25 : vector<8x3xf32>
    %c0_14 = arith.constant 0 : index
    %c0_15 = arith.constant 0 : index
    %27 = vector.load %arg4[%c0_14, %c0_15] : memref<8x3xf32, #tpu.memory_space<vmem>>, vector<8x3xf32>
    tpu.vector_store %arg4[%c0_14, %c0_15], %26 {strides = array<i32>} : memref<8x3xf32, #tpu.memory_space<vmem>>, vector<8x3xf32>,
    %c992 = arith.constant 992 : index
    %c0_16 = arith.constant 0 : index
    %28 = vector.load %arg2[%c992, %c0_16] : memref<1216x784xbf16, #tpu.memory_space<vmem>>, vector<12x12xbf16>
    %c4 = arith.constant 4 : index
    %c0_17 = arith.constant 0 : index
    %29 = vector.load %arg3[%c4, %c0_17] : memref<8x784xf32, #tpu.memory_space<vmem>>, vector<1x12xf32>
    %cst_18 = arith.constant dense<0.000000e+00> : vector<8x12xf32>
    %30 = tpu.matmul %21, %28, %cst_18 {dimension_numbers = #tpu.dot_dimension_numbers<[1], [0], [0], [1], [0, 0, 1, 1], [], []>} : vector<8x12xbf16>, vector<12x12xbf16>, vector<8x12xf32> -> vector<8x12xf32>
    %31 = vector.broadcast %29 : vector<1x12xf32> to vector<8x12xf32>
    %32 = arith.addf %30, %31 : vector<8x12xf32>
    %33 = math.tanh %32 : vector<8x12xf32>
    %34 = arith.truncf %33 : vector<8x12xf32> to vector<8x12xbf16>
    %c1008 = arith.constant 1008 : index
    %c0_19 = arith.constant 0 : index
    %35 = vector.load %arg2[%c1008, %c0_19] : memref<1216x784xbf16, #tpu.memory_space<vmem>>, vector<12x64xbf16>
    %c5 = arith.constant 5 : index
    %c0_20 = arith.constant 0 : index
    %36 = vector.load %arg3[%c5, %c0_20] : memref<8x784xf32, #tpu.memory_space<vmem>>, vector<1x64xf32>
    %cst_21 = arith.constant dense<0.000000e+00> : vector<8x64xf32>
    %37 = tpu.matmul %34, %35, %cst_21 {dimension_numbers = #tpu.dot_dimension_numbers<[1], [0], [0], [1], [0, 0, 1, 1], [], []>} : vector<8x12xbf16>, vector<12x64xbf16>, vector<8x64xf32> -> vector<8x64xf32>
    %38 = vector.broadcast %36 : vector<1x64xf32> to vector<8x64xf32>
    %39 = arith.addf %37, %38 : vector<8x64xf32>
    %40 = math.tanh %39 : vector<8x64xf32>
    %41 = arith.truncf %40 : vector<8x64xf32> to vector<8x64xbf16>
    %c1024 = arith.constant 1024 : index
    %c0_22 = arith.constant 0 : index
    %42 = vector.load %arg2[%c1024, %c0_22] : memref<1216x784xbf16, #tpu.memory_space<vmem>>, vector<64x128xbf16>
    %c6 = arith.constant 6 : index
    %c0_23 = arith.constant 0 : index
    %43 = vector.load %arg3[%c6, %c0_23] : memref<8x784xf32, #tpu.memory_space<vmem>>, vector<1x128xf32>
    %cst_24 = arith.constant dense<0.000000e+00> : vector<8x128xf32>
    %44 = tpu.matmul %41, %42, %cst_24 {dimension_numbers = #tpu.dot_dimension_numbers<[1], [0], [0], [1], [0, 0, 1, 1], [], []>} : vector<8x64xbf16>, vector<64x128xbf16>, vector<8x128xf32> -> vector<8x128xf32>
    %45 = vector.broadcast %43 : vector<1x128xf32> to vector<8x128xf32>
    %46 = arith.addf %44, %45 : vector<8x128xf32>
    %47 = math.tanh %46 : vector<8x128xf32>
    %48 = arith.truncf %47 : vector<8x128xf32> to vector<8x128xbf16>
    %c1088 = arith.constant 1088 : index
    %c0_25 = arith.constant 0 : index
    %49 = vector.load %arg2[%c1088, %c0_25] : memref<1216x784xbf16, #tpu.memory_space<vmem>>, vector<128x784xbf16>
    %c7 = arith.constant 7 : index
    %c0_26 = arith.constant 0 : index
    %50 = vector.load %arg3[%c7, %c0_26] : memref<8x784xf32, #tpu.memory_space<vmem>>, vector<1x784xf32>
    %cst_27 = arith.constant dense<0.000000e+00> : vector<8x784xf32>
    %51 = tpu.matmul %48, %49, %cst_27 {dimension_numbers = #tpu.dot_dimension_numbers<[1], [0], [0], [1], [0, 0, 1, 1], [], []>} : vector<8x128xbf16>, vector<128x784xbf16>, vector<8x784xf32> -> vector<8x784xf32>
    %52 = vector.broadcast %50 : vector<1x784xf32> to vector<8x784xf32>
    %53 = arith.addf %51, %52 : vector<8x784xf32>
    %cst_28 = arith.constant 5.000000e-01 : f32
    %54 = vector.broadcast %cst_28 : f32 to vector<8x784xf32>
    %55 = arith.mulf %54, %53 : vector<8x784xf32>
    %56 = math.tanh %55 : vector<8x784xf32>
    %cst_29 = arith.constant 1.000000e+00 : f32
    %57 = vector.broadcast %cst_29 : f32 to vector<8x784xf32>
    %58 = arith.addf %56, %57 : vector<8x784xf32>
    %cst_30 = arith.constant 5.000000e-01 : f32
    %59 = vector.broadcast %cst_30 : f32 to vector<8x784xf32>
    %60 = arith.mulf %59, %58 : vector<8x784xf32>
    %61 = arith.truncf %60 : vector<8x784xf32> to vector<8x784xbf16>
    %c0_31 = arith.constant 0 : index
    %c0_32 = arith.constant 0 : index
    %62 = vector.load %arg5[%c0_31, %c0_32] : memref<8x784xbf16, #tpu.memory_space<vmem>>, vector<8x784xbf16>
    tpu.vector_store %arg5[%c0_31, %c0_32], %61 {strides = array<i32>} : memref<8x784xbf16, #tpu.memory_space<vmem>>, vector<8x784xbf16>,
    return
  }
  func.func @transform_0(%arg0: i32) -> (i32, i32) {
    %c0_i32 = arith.constant 0 : i32
    %c0_i32_0 = arith.constant 0 : i32
    return %arg0, %c0_i32 : i32, i32
  }
  func.func @transform_1(%arg0: i32) -> (i32, i32) {
    %c0_i32 = arith.constant 0 : i32
    %c0_i32_0 = arith.constant 0 : i32
    %c0_i32_1 = arith.constant 0 : i32
    return %c0_i32, %c0_i32_0 : i32, i32
  }
  func.func @transform_2(%arg0: i32) -> (i32, i32) {
    %c0_i32 = arith.constant 0 : i32
    %c0_i32_0 = arith.constant 0 : i32
    %c0_i32_1 = arith.constant 0 : i32
    return %c0_i32, %c0_i32_0 : i32, i32
  }
  func.func @transform_3(%arg0: i32) -> (i32, i32) {
    %c0_i32 = arith.constant 0 : i32
    %c0_i32_0 = arith.constant 0 : i32
    return %arg0, %c0_i32 : i32, i32
  }
  func.func @transform_4(%arg0: i32) -> (i32, i32) {
    %c0_i32 = arith.constant 0 : i32
    %c0_i32_0 = arith.constant 0 : i32
    return %arg0, %c0_i32 : i32, i32
  }
}

</mosaic_0001>

<llo_original>
// kernel: autoencoder_forward.1
$region0: #{autoencoder_forward.1}
  #allocation0 [shape = 'u32[]', space=smem, size = 0x4, offset = 0x4, fixed_abs, tag = 'smem constant byte address 0x4 - core index']
  #allocation1 [shape = 'u32[144,128]{1,0:T(1,128)}', space=vmem, size = 0x12000, scoped, tag = 'internal scratch']
  %s0 = inlined_call_operand.vmem [shape: bf16[16,784], index: 0, kind: input, shape index: {}]
  %s1 = inlined_call_operand.vmem [shape: bf16[1216,784], index: 1, kind: input, shape index: {}]
  %s2 = inlined_call_operand.vmem [shape: f32[8,784], index: 2, kind: input, shape index: {}]
  %s3 = inlined_call_operand.vmem [shape: f32[16,3], index: 3, kind: output, shape index: {0}]
  %s4 = inlined_call_operand.hbm [shape: bf16[16,784], index: 4, kind: output, shape index: {1}]
  %5 = xla_tuple %s3, %s4
  %s6 = sld [smem:[#allocation0]]
  $region53: #{autoencoder_forward.1} parent=0
    _
  %s8 = ssub.s32 1, %s6
  %s9 = scalar_select 0, %s8, %s6
  $region1: #{autoencoder_forward.1} parent=0
    #allocation2 [shape = 'u8[28672]{0}', space=vmem, size = 0x7000, scoped, tag = 'output window, operand 1']
    #allocation3 [shape = 's32[2]{0}', space=sflag, size = 0x8, scoped, tag = 'scoped memory for autoencoder_forward.1']
    %10 = vsyncpa [#allocation3], 0
    %s11 = scalar_lea.sflag [#allocation3], 1
    %12 = vsyncpa %s11, 0
    loop: start=0, step=1, limit=4
    $region2: #{autoencoder_forward.1} parent=1 // loop_pre_header
      _
    $region3: #{autoencoder_forward.1} parent=1 // loop_header
      %s14 = sphi 0, %s18
      %p15 = scmp.ge.s32.totalorder %s14, 4
      %s24 = sphi 0, %s26
      %s27 = sphi 0, %s24
      %s28 = sphi 0, %s27
      %s44 = sphi 0, %s28
      %s48 = sphi 0, %s48
      %s50 = sphi 0, %s48
      %s51 = sphi 0, %s50
      %s65 = sphi 0, %s51
      %s69 = sphi 0, %s69
      %s71 = sphi 0, %s69
      %s72 = sphi 0, %s71
      %s86 = sphi 0, %s72
      %s92 = sphi 0, %s94
      %s95 = sphi 0, %s92
      %s96 = sphi 0, %s95
      %s112 = sphi 0, %s96
      %s118 = sphi 0, %s120
      %s121 = sphi 0, %s118
      %s122 = sphi 0, %s121
      %s138 = sphi 0, %s122
    $region4: #{autoencoder_forward.1} parent=1 // loop_header_branch
      %17 = sbr.rel (%p15) target = $region8
    $region5: #{autoencoder_forward.1} parent=1 // loop_body
      %s19 = ssub.s32 %s14, 1
      %s20 = ssub.s32 %s14, 2
      %s21 = sadd.s32 %s14, 1
      %s22 = ssub.s32 %s14, %s21
      %p23 = scmp.eq.s32.totalorder %s22, 0
      %s25 = sadd.s32 %s24, 1
      %s26 = scalar_select %p23, %s24, %s25
      %p29 = pneg %p23
      %p30 = scmp.eq.s32.totalorder %s14, 1
      %p31 = por %p29, %p30
      %p32 = scmp.ne.s32.totalorder %s24, %s27
      %p33 = scmp.eq.s32.totalorder %s14, 0
      %p34 = por %p32, %p33
      %p35 = scmp.ne.s32.totalorder %s24, %s27
      %p36 = scmp.eq.s32.totalorder %s19, 1
      %p37 = por %p35, %p36
      %p38 = scmp.ne.s32.totalorder %s27, %s28
      %p39 = scmp.eq.s32.totalorder %s19, 0
      %p40 = por %p38, %p39
      %p41 = scmp.ne.s32.totalorder %s27, %s28
      %p42 = scmp.eq.s32.totalorder %s20, 1
      %p43 = por %p41, %p42
      %p45 = scmp.ne.s32.totalorder %s28, %s44
      %p46 = scmp.eq.s32.totalorder %s20, 0
      %p47 = por %p45, %p46
      %s49 = sadd.s32 %s48, 1
      %p52 = scmp.eq.s32.totalorder %s14, 1
      %p53 = scmp.ne.s32.totalorder %s48, %s50
      %p54 = scmp.eq.s32.totalorder %s14, 0
      %p55 = por %p53, %p54
      %p56 = scmp.ne.s32.totalorder %s48, %s50
      %p57 = scmp.eq.s32.totalorder %s19, 1
      %p58 = por %p56, %p57
      %p59 = scmp.ne.s32.totalorder %s50, %s51
      %p60 = scmp.eq.s32.totalorder %s19, 0
      %p61 = por %p59, %p60
      %p62 = scmp.ne.s32.totalorder %s50, %s51
      %p63 = scmp.eq.s32.totalorder %s20, 1
      %p64 = por %p62, %p63
      %p66 = scmp.ne.s32.totalorder %s51, %s65
      %p67 = scmp.eq.s32.totalorder %s20, 0
      %p68 = por %p66, %p67
      %s70 = sadd.s32 %s69, 1
      %p73 = scmp.eq.s32.totalorder %s14, 1
      %p74 = scmp.ne.s32.totalorder %s69, %s71
      %p75 = scmp.eq.s32.totalorder %s14, 0
      %p76 = por %p74, %p75
      %p77 = scmp.ne.s32.totalorder %s69, %s71
      %p78 = scmp.eq.s32.totalorder %s19, 1
      %p79 = por %p77, %p78
      %p80 = scmp.ne.s32.totalorder %s71, %s72
      %p81 = scmp.eq.s32.totalorder %s19, 0
      %p82 = por %p80, %p81
      %p83 = scmp.ne.s32.totalorder %s71, %s72
      %p84 = scmp.eq.s32.totalorder %s20, 1
      %p85 = por %p83, %p84
      %p87 = scmp.ne.s32.totalorder %s72, %s86
      %p88 = scmp.eq.s32.totalorder %s20, 0
      %p89 = por %p87, %p88
      %s90 = ssub.s32 %s14, %s21
      %p91 = scmp.eq.s32.totalorder %s90, 0
      %s93 = sadd.s32 %s92, 1
      %s94 = scalar_select %p91, %s92, %s93
      %p97 = pneg %p91
      %p98 = scmp.eq.s32.totalorder %s14, 1
      %p99 = por %p97, %p98
      %p100 = scmp.ne.s32.totalorder %s92, %s95
      %p101 = scmp.eq.s32.totalorder %s14, 0
      %p102 = por %p100, %p101
      %p103 = scmp.ne.s32.totalorder %s92, %s95
      %p104 = scmp.eq.s32.totalorder %s19, 1
      %p105 = por %p103, %p104
      %p106 = scmp.ne.s32.totalorder %s95, %s96
      %p107 = scmp.eq.s32.totalorder %s19, 0
      %p108 = por %p106, %p107
      %p109 = scmp.ne.s32.totalorder %s95, %s96
      %p110 = scmp.eq.s32.totalorder %s20, 1
      %p111 = por %p109, %p110
      %p113 = scmp.ne.s32.totalorder %s96, %s112
      %p114 = scmp.eq.s32.totalorder %s20, 0
      %p115 = por %p113, %p114
      %s116 = ssub.s32 %s14, %s21
      %p117 = scmp.eq.s32.totalorder %s116, 0
      %s119 = sadd.s32 %s118, 1
      %s120 = scalar_select %p117, %s118, %s119
      %p123 = pneg %p117
      %p124 = scmp.eq.s32.totalorder %s14, 1
      %p125 = por %p123, %p124
      %p126 = scmp.ne.s32.totalorder %s118, %s121
      %p127 = scmp.eq.s32.totalorder %s14, 0
      %p128 = por %p126, %p127
      %p129 = scmp.ne.s32.totalorder %s118, %s121
      %p130 = scmp.eq.s32.totalorder %s19, 1
      %p131 = por %p129, %p130
      %p132 = scmp.ne.s32.totalorder %s121, %s122
      %p133 = scmp.eq.s32.totalorder %s19, 0
      %p134 = por %p132, %p133
      %p135 = scmp.ne.s32.totalorder %s121, %s122
      %p136 = scmp.eq.s32.totalorder %s20, 1
      %p137 = por %p135, %p136
      %p139 = scmp.ne.s32.totalorder %s122, %s138
      %p140 = scmp.eq.s32.totalorder %s20, 0
      %p141 = por %p139, %p140
      %p142 = scmp.le.s32.totalorder 1, %s14
      %p143 = scmp.lt.s32.totalorder %s14, 3
      %p144 = pnand %p142, %p143
      %p145 = pneg %p144
      // Predicated region
      $region9: #{autoencoder_forward.1} parent=5 // pred_check
        _
      $region10: #{autoencoder_forward.1} parent=5 // pred_check_branch
        %147 = sbr.rel (%p144) target = $region12
      $region11: #{autoencoder_forward.1} parent=5 // pred_region
        %s148 = ssub.s32 %s14, 1
        // Predicated region
        $region13: #{autoencoder_forward.1} parent=11 // pred_check
          %p149 = pneg %p61
        $region14: #{autoencoder_forward.1} parent=11 // pred_check_branch
          %151 = sbr.rel (%p149) target = $region16
        $region15: #{autoencoder_forward.1} parent=11 // pred_region
          _
        $region16: #{autoencoder_forward.1} parent=11 // pred_fallthru
          _
        // Predicated region
        $region17: #{autoencoder_forward.1} parent=11 // pred_check
          %p152 = pneg %p82
        $region18: #{autoencoder_forward.1} parent=11 // pred_check_branch
          %154 = sbr.rel (%p152) target = $region20
        $region19: #{autoencoder_forward.1} parent=11 // pred_region
          _
        $region20: #{autoencoder_forward.1} parent=11 // pred_fallthru
          _
      $region12: #{autoencoder_forward.1} parent=5 // pred_fallthru
        _
      %p155 = scmp.lt.s32.totalorder %s14, 2
      // Predicated region
      $region21: #{autoencoder_forward.1} parent=5 // pred_check
        %p156 = pneg %p155
      $region22: #{autoencoder_forward.1} parent=5 // pred_check_branch
        %158 = sbr.rel (%p156) target = $region24
      $region23: #{autoencoder_forward.1} parent=5 // pred_region
        // Predicated region
        $region25: #{autoencoder_forward.1} parent=23 // pred_check
          %p159 = pneg %p34
        $region26: #{autoencoder_forward.1} parent=23 // pred_check_branch
          %161 = sbr.rel (%p159) target = $region28
        $region27: #{autoencoder_forward.1} parent=23 // pred_region
          %p162 = scmp.lt.s32.totalorder %s14, 1
          %s163 = scalar_select %p162, %s14, 1
          %s164 = smul.addr %s163, 7
          %s165 = smul.addr %s164, 4
          %s166 = scalar_lea.vmem %s0, %s165
        $region28: #{autoencoder_forward.1} parent=23 // pred_fallthru
          _
      $region24: #{autoencoder_forward.1} parent=5 // pred_fallthru
        _
      %p167 = scmp.le.s32.totalorder 1, %s14
      %p168 = scmp.lt.s32.totalorder %s14, 3
      %p169 = pnand %p167, %p168
      %p170 = pneg %p169
      // Predicated region
      $region29: #{autoencoder_forward.1} parent=5 // pred_check
        _
      $region30: #{autoencoder_forward.1} parent=5 // pred_check_branch
        %172 = sbr.rel (%p169) target = $region32
      $region31: #{autoencoder_forward.1} parent=5 // pred_region
        %s173 = ssub.s32 %s14, 1
        %p174 = scmp.lt.s32.totalorder %s19, 1
        %s175 = scalar_select %p174, %s19, 1
        %s176 = smul.addr %s175, 7
        %s177 = smul.addr %s176, 4
        %s178 = scalar_lea.vmem %s0, %s177
        %p179 = pneg %p40
        %p180 = pneg %p37
        %p181 = pneg %p61
        %p182 = pneg %p58
        %p183 = pneg %p82
        %p184 = pneg %p79
        %p185 = pneg %p108
        %p186 = pneg %p105
        %p187 = scmp.lt.s32.totalorder %s19, 1
        %s188 = scalar_select %p187, %s19, 1
        %s189 = smul.addr %s188, 8
        %s190 = scalar_lea.vmem %s3, %s189
        %p191 = pneg %p134
        %p192 = pneg %p131
        %s193 = sand.u32 %s121, 1
        %s194 = scalar_lea.sflag [#allocation3], %s193
        %s195 = sand.u32 %s121, 1
        %s196 = smul.addr %s195, 28
        %s197 = scalar_lea.vmem [#allocation2], %s196
        %p198 = scmp.lt.s32.totalorder %s19, 1
        %s199 = scalar_select %p198, %s19, 1
        %s200 = smul.addr %s199, 7
        %s201 = smul.addr %s200, 4
        %s202 = scalar_lea.vmem %s0, %s201
        %p203 = scmp.lt.s32.totalorder %s19, 1
        %s204 = scalar_select %p203, %s19, 1
        %s205 = smul.addr %s204, 8
        %s206 = scalar_lea.vmem %s3, %s205
        %v208 = vld [vmem:[%s202] sm:$0xff]
        %v209 = vld [vmem:[%s202 + $0x8] sm:$0xff]
        %v210 = vld [vmem:[%s202 + $0x10] sm:$0xff]
        %v211 = vld [vmem:[%s202 + $0x18] sm:$0xf]
        %v212 = vld [vmem:[%s1] sm:$0xf]
        %v213 = vld [vmem:[%s1 + $0x1c] sm:$0xf]
        %v214 = vld [vmem:[%s1 + $0x38] sm:$0xf]
        %v215 = vld [vmem:[%s1 + $0x54] sm:$0xf]
        %v216 = vld [vmem:[%s1 + $0x70] sm:$0xf]
        %v217 = vld [vmem:[%s1 + $0x8c] sm:$0xf]
        %v218 = vld [vmem:[%s1 + $0xa8] sm:$0xf]
        %v219 = vld [vmem:[%s1 + $0xc4] sm:$0xf]
        %v220 = vld [vmem:[%s1 + $0xe0] sm:$0xf]
        %v221 = vld [vmem:[%s1 + $0xfc] sm:$0xf]
        %v222 = vld [vmem:[%s1 + $0x118] sm:$0xf]
        %v223 = vld [vmem:[%s1 + $0x134] sm:$0xf]
        %v224 = vld [vmem:[%s1 + $0x150] sm:$0xf]
        %v225 = vld [vmem:[%s1 + $0x16c] sm:$0xf]
        %v226 = vld [vmem:[%s1 + $0x188] sm:$0xf]
        %v227 = vld [vmem:[%s1 + $0x1a4] sm:$0xf]
        %v228 = vld [vmem:[%s1 + $0x1c0] sm:$0xf]
        %v229 = vld [vmem:[%s1 + $0x1dc] sm:$0xf]
        %v230 = vld [vmem:[%s1 + $0x1f8] sm:$0xf]
        %v231 = vld [vmem:[%s1 + $0x214] sm:$0xf]
        %v232 = vld [vmem:[%s1 + $0x230] sm:$0xf]
        %v233 = vld [vmem:[%s1 + $0x24c] sm:$0xf]
        %v234 = vld [vmem:[%s1 + $0x268] sm:$0xf]
        %v235 = vld [vmem:[%s1 + $0x284] sm:$0xf]
        %v236 = vld [vmem:[%s1 + $0x2a0] sm:$0xf]
        %v237 = vld [vmem:[%s1 + $0x2bc] sm:$0xf]
        %v238 = vld [vmem:[%s1 + $0x2d8] sm:$0xf]
        %v239 = vld [vmem:[%s1 + $0x2f4] sm:$0xf]
        %v240 = vld [vmem:[%s1 + $0x310] sm:$0xf]
        %v241 = vld [vmem:[%s1 + $0x32c] sm:$0xf]
        %v242 = vld [vmem:[%s1 + $0x348] sm:$0xf]
        %v243 = vld [vmem:[%s1 + $0x364] sm:$0xf]
        %v244 = vld [vmem:[%s1 + $0x380] sm:$0xf]
        %v245 = vld [vmem:[%s1 + $0x39c] sm:$0xf]
        %v246 = vld [vmem:[%s1 + $0x3b8] sm:$0xf]
        %v247 = vld [vmem:[%s1 + $0x3d4] sm:$0xf]
        %v248 = vld [vmem:[%s1 + $0x3f0] sm:$0xf]
        %v249 = vld [vmem:[%s1 + $0x40c] sm:$0xf]
        %v250 = vld [vmem:[%s1 + $0x428] sm:$0xf]
        %v251 = vld [vmem:[%s1 + $0x444] sm:$0xf]
        %v252 = vld [vmem:[%s1 + $0x460] sm:$0xf]
        %v253 = vld [vmem:[%s1 + $0x47c] sm:$0xf]
        %v254 = vld [vmem:[%s1 + $0x498] sm:$0xf]
        %v255 = vld [vmem:[%s1 + $0x4b4] sm:$0xf]
        %v256 = vld [vmem:[%s1 + $0x4d0] sm:$0xf]
        %v257 = vld [vmem:[%s1 + $0x4ec] sm:$0xf]
        %v258 = vld [vmem:[%s1 + $0x508] sm:$0xf]
        %v259 = vld [vmem:[%s1 + $0x524] sm:$0xf]
        %v260 = vld [vmem:[%s1 + $0x540] sm:$0xf]
        %v261 = vld [vmem:[%s1 + $0x55c] sm:$0xf]
        %v262 = vld [vmem:[%s1 + $0x578] sm:$0xf]
        %v263 = vld [vmem:[%s1 + $0x594] sm:$0xf]
        %v264 = vld [vmem:[%s1 + $0x5b0] sm:$0xf]
        %v265 = vld [vmem:[%s1 + $0x5cc] sm:$0xf]
        %v266 = vld [vmem:[%s1 + $0x5e8] sm:$0xf]
        %v267 = vld [vmem:[%s1 + $0x604] sm:$0xf]
        %v268 = vld [vmem:[%s1 + $0x620] sm:$0xf]
        %v269 = vld [vmem:[%s1 + $0x63c] sm:$0xf]
        %v270 = vld [vmem:[%s1 + $0x658] sm:$0xf]
        %v271 = vld [vmem:[%s1 + $0x674] sm:$0xf]
        %v272 = vld [vmem:[%s1 + $0x690] sm:$0xf]
        %v273 = vld [vmem:[%s1 + $0x6ac] sm:$0xf]
        %v274 = vld [vmem:[%s1 + $0x6c8] sm:$0xf]
        %v275 = vld [vmem:[%s1 + $0x6e4] sm:$0xf]
        %v276 = vld [vmem:[%s1 + $0x700] sm:$0xf]
        %v277 = vld [vmem:[%s1 + $0x71c] sm:$0xf]
        %v278 = vld [vmem:[%s1 + $0x738] sm:$0xf]
        %v279 = vld [vmem:[%s1 + $0x754] sm:$0xf]
        %v280 = vld [vmem:[%s1 + $0x770] sm:$0xf]
        %v281 = vld [vmem:[%s1 + $0x78c] sm:$0xf]
        %v282 = vld [vmem:[%s1 + $0x7a8] sm:$0xf]
        %v283 = vld [vmem:[%s1 + $0x7c4] sm:$0xf]
        %v284 = vld [vmem:[%s1 + $0x7e0] sm:$0xf]
        %v285 = vld [vmem:[%s1 + $0x7fc] sm:$0xf]
        %v286 = vld [vmem:[%s1 + $0x818] sm:$0xf]
        %v287 = vld [vmem:[%s1 + $0x834] sm:$0xf]
        %v288 = vld [vmem:[%s1 + $0x850] sm:$0xf]
        %v289 = vld [vmem:[%s1 + $0x86c] sm:$0xf]
        %v290 = vld [vmem:[%s1 + $0x888] sm:$0xf]
        %v291 = vld [vmem:[%s1 + $0x8a4] sm:$0xf]
        %v292 = vld [vmem:[%s1 + $0x8c0] sm:$0xf]
        %v293 = vld [vmem:[%s1 + $0x8dc] sm:$0xf]
        %v294 = vld [vmem:[%s1 + $0x8f8] sm:$0xf]
        %v295 = vld [vmem:[%s1 + $0x914] sm:$0xf]
        %v296 = vld [vmem:[%s1 + $0x930] sm:$0xf]
        %v297 = vld [vmem:[%s1 + $0x94c] sm:$0xf]
        %v298 = vld [vmem:[%s1 + $0x968] sm:$0xf]
        %v299 = vld [vmem:[%s1 + $0x984] sm:$0xf]
        %v300 = vld [vmem:[%s1 + $0x9a0] sm:$0xf]
        %v301 = vld [vmem:[%s1 + $0x9bc] sm:$0xf]
        %v302 = vld [vmem:[%s1 + $0x9d8] sm:$0xf]
        %v303 = vld [vmem:[%s1 + $0x9f4] sm:$0xf]
        %v304 = vld [vmem:[%s1 + $0xa10] sm:$0xf]
        %v305 = vld [vmem:[%s1 + $0xa2c] sm:$0xf]
        %v306 = vld [vmem:[%s1 + $0xa48] sm:$0xf]
        %v307 = vld [vmem:[%s1 + $0xa64] sm:$0xf]
        %v308 = vld [vmem:[%s1 + $0xa80] sm:$0xf]
        %v309 = vld [vmem:[%s1 + $0xa9c] sm:$0xf]
        %v310 = vld [vmem:[%s2] ss:$0 sm:$0xff]
        %v315 = vunpack.c.l.b16 %v208
        %v316 = vunpack.c.h.b16 %v208
        %v317 = vunpack.c.l.b16 %v209
        %v318 = vunpack.c.h.b16 %v209
        %v319 = vunpack.c.l.b16 %v210
        %v320 = vunpack.c.h.b16 %v210
        %v321 = vunpack.c.l.b16 %v211
        %v322 = vpack.c.b16 %v315, %v315
        %v323 = vpack.c.b16 %v316, %v316
        %v324 = vpack.c.b16 %v317, %v317
        %v325 = vpack.c.b16 %v318, %v318
        %v326 = vpack.c.b16 %v319, %v319
        %v327 = vpack.c.b16 %v320, %v320
        %v328 = vpack.c.b16 %v321, %v321
        %v433 = vunpack.c.l.b16 %v212
        %v434 = vunpack.c.l.b16 %v213
        %v435 = vunpack.c.l.b16 %v214
        %v436 = vunpack.c.l.b16 %v215
        %v437 = vunpack.c.l.b16 %v216
        %v438 = vunpack.c.l.b16 %v217
        %v439 = vunpack.c.l.b16 %v218
        %v440 = vunpack.c.l.b16 %v219
        %v441 = vunpack.c.l.b16 %v220
        %v442 = vunpack.c.l.b16 %v221
        %v443 = vunpack.c.l.b16 %v222
        %v444 = vunpack.c.l.b16 %v223
        %v445 = vunpack.c.l.b16 %v224
        %v446 = vunpack.c.l.b16 %v225
        %v447 = vunpack.c.l.b16 %v226
        %v448 = vunpack.c.l.b16 %v227
        %v449 = vunpack.c.l.b16 %v228
        %v450 = vunpack.c.l.b16 %v229
        %v451 = vunpack.c.l.b16 %v230
        %v452 = vunpack.c.l.b16 %v231
        %v453 = vunpack.c.l.b16 %v232
        %v454 = vunpack.c.l.b16 %v233
        %v455 = vunpack.c.l.b16 %v234
        %v456 = vunpack.c.l.b16 %v235
        %v457 = vunpack.c.l.b16 %v236
        %v458 = vunpack.c.l.b16 %v237
        %v459 = vunpack.c.l.b16 %v238
        %v460 = vunpack.c.l.b16 %v239
        %v461 = vunpack.c.l.b16 %v240
        %v462 = vunpack.c.l.b16 %v241
        %v463 = vunpack.c.l.b16 %v242
        %v464 = vunpack.c.l.b16 %v243
        %v465 = vunpack.c.l.b16 %v244
        %v466 = vunpack.c.l.b16 %v245
        %v467 = vunpack.c.l.b16 %v246
        %v468 = vunpack.c.l.b16 %v247
        %v469 = vunpack.c.l.b16 %v248
        %v470 = vunpack.c.l.b16 %v249
        %v471 = vunpack.c.l.b16 %v250
        %v472 = vunpack.c.l.b16 %v251
        %v473 = vunpack.c.l.b16 %v252
        %v474 = vunpack.c.l.b16 %v253
        %v475 = vunpack.c.l.b16 %v254
        %v476 = vunpack.c.l.b16 %v255
        %v477 = vunpack.c.l.b16 %v256
        %v478 = vunpack.c.l.b16 %v257
        %v479 = vunpack.c.l.b16 %v258
        %v480 = vunpack.c.l.b16 %v259
        %v481 = vunpack.c.l.b16 %v260
        %v482 = vunpack.c.l.b16 %v261
        %v483 = vunpack.c.l.b16 %v262
        %v484 = vunpack.c.l.b16 %v263
        %v485 = vunpack.c.l.b16 %v264
        %v486 = vunpack.c.l.b16 %v265
        %v487 = vunpack.c.l.b16 %v266
        %v488 = vunpack.c.l.b16 %v267
        %v489 = vunpack.c.l.b16 %v268
        %v490 = vunpack.c.l.b16 %v269
        %v491 = vunpack.c.l.b16 %v270
        %v492 = vunpack.c.l.b16 %v271
        %v493 = vunpack.c.l.b16 %v272
        %v494 = vunpack.c.l.b16 %v273
        %v495 = vunpack.c.l.b16 %v274
        %v496 = vunpack.c.l.b16 %v275
        %v497 = vunpack.c.l.b16 %v276
        %v498 = vunpack.c.l.b16 %v277
        %v499 = vunpack.c.l.b16 %v278
        %v500 = vunpack.c.l.b16 %v279
        %v501 = vunpack.c.l.b16 %v280
        %v502 = vunpack.c.l.b16 %v281
        %v503 = vunpack.c.l.b16 %v282
        %v504 = vunpack.c.l.b16 %v283
        %v505 = vunpack.c.l.b16 %v284
        %v506 = vunpack.c.l.b16 %v285
        %v507 = vunpack.c.l.b16 %v286
        %v508 = vunpack.c.l.b16 %v287
        %v509 = vunpack.c.l.b16 %v288
        %v510 = vunpack.c.l.b16 %v289
        %v511 = vunpack.c.l.b16 %v290
        %v512 = vunpack.c.l.b16 %v291
        %v513 = vunpack.c.l.b16 %v292
        %v514 = vunpack.c.l.b16 %v293
        %v515 = vunpack.c.l.b16 %v294
        %v516 = vunpack.c.l.b16 %v295
        %v517 = vunpack.c.l.b16 %v296
        %v518 = vunpack.c.l.b16 %v297
        %v519 = vunpack.c.l.b16 %v298
        %v520 = vunpack.c.l.b16 %v299
        %v521 = vunpack.c.l.b16 %v300
        %v522 = vunpack.c.l.b16 %v301
        %v523 = vunpack.c.l.b16 %v302
        %v524 = vunpack.c.l.b16 %v303
        %v525 = vunpack.c.l.b16 %v304
        %v526 = vunpack.c.l.b16 %v305
        %v527 = vunpack.c.l.b16 %v306
        %v528 = vunpack.c.l.b16 %v307
        %v529 = vunpack.c.l.b16 %v308
        %v530 = vunpack.c.l.b16 %v309
        %v531 = vpack.c.b16 %v434, %v433
        %v532 = vpack.c.b16 %v436, %v435
        %v533 = vpack.c.b16 %v438, %v437
        %v534 = vpack.c.b16 %v440, %v439
        %v535 = vpack.c.b16 %v442, %v441
        %v536 = vpack.c.b16 %v444, %v443
        %v537 = vpack.c.b16 %v446, %v445
        %v538 = vpack.c.b16 %v448, %v447
        %v539 = vpack.c.b16 %v450, %v449
        %v540 = vpack.c.b16 %v452, %v451
        %v541 = vpack.c.b16 %v454, %v453
        %v542 = vpack.c.b16 %v456, %v455
        %v543 = vpack.c.b16 %v458, %v457
        %v544 = vpack.c.b16 %v460, %v459
        %v545 = vpack.c.b16 %v462, %v461
        %v546 = vpack.c.b16 %v464, %v463
        %v547 = vpack.c.b16 %v466, %v465
        %v548 = vpack.c.b16 %v468, %v467
        %v549 = vpack.c.b16 %v470, %v469
        %v550 = vpack.c.b16 %v472, %v471
        %v551 = vpack.c.b16 %v474, %v473
        %v552 = vpack.c.b16 %v476, %v475
        %v553 = vpack.c.b16 %v478, %v477
        %v554 = vpack.c.b16 %v480, %v479
        %v555 = vpack.c.b16 %v482, %v481
        %v556 = vpack.c.b16 %v484, %v483
        %v557 = vpack.c.b16 %v486, %v485
        %v558 = vpack.c.b16 %v488, %v487
        %v559 = vpack.c.b16 %v490, %v489
        %v560 = vpack.c.b16 %v492, %v491
        %v561 = vpack.c.b16 %v494, %v493
        %v562 = vpack.c.b16 %v496, %v495
        %v563 = vpack.c.b16 %v498, %v497
        %v564 = vpack.c.b16 %v500, %v499
        %v565 = vpack.c.b16 %v502, %v501
        %v566 = vpack.c.b16 %v504, %v503
        %v567 = vpack.c.b16 %v506, %v505
        %v568 = vpack.c.b16 %v508, %v507
        %v569 = vpack.c.b16 %v510, %v509
        %v570 = vpack.c.b16 %v512, %v511
        %v571 = vpack.c.b16 %v514, %v513
        %v572 = vpack.c.b16 %v516, %v515
        %v573 = vpack.c.b16 %v518, %v517
        %v574 = vpack.c.b16 %v520, %v519
        %v575 = vpack.c.b16 %v522, %v521
        %v576 = vpack.c.b16 %v524, %v523
        %v577 = vpack.c.b16 %v526, %v525
        %v578 = vpack.c.b16 %v528, %v527
        %v579 = vpack.c.b16 %v530, %v529
        %vm629 = vcmask 130048
        %v631 = vsel %vm629, %v328, 0
        %633 = vmatprep.subr.bf16.mxu0 0
        %634 = vmatpush1.bf16.msra.mxu0 %v531
        %635 = vmatprep.subr.bf16.mxu0 0
        %636 = vmatpush1.bf16.msra.mxu0 %v532
        %637 = vmatprep.subr.bf16.mxu0 0
        %638 = vmatpush1.bf16.msra.mxu0 %v533
        %639 = vmatprep.subr.bf16.mxu0 0
        %640 = vmatpush1.bf16.msra.mxu0 %v534
        %641 = vmatprep.subr.bf16.mxu0 0
        %642 = vmatpush1.bf16.msra.mxu0 %v535
        %643 = vmatprep.subr.bf16.mxu0 0
        %644 = vmatpush1.bf16.msra.mxu0 %v536
        %645 = vmatprep.subr.bf16.mxu0 0
        %646 = vmatpush1.bf16.msra.mxu0 %v537
        %647 = vmatprep.subr.bf16.mxu0 0
        %648 = vmatpush1.bf16.msra.mxu0 %v538
        %649 = vmatprep.subr.bf16.mxu0 0
        %650 = vmatpush1.bf16.msra.mxu0 %v539
        %651 = vmatprep.subr.bf16.mxu0 0
        %652 = vmatpush1.bf16.msra.mxu0 %v540
        %653 = vmatprep.subr.bf16.mxu0 0
        %654 = vmatpush1.bf16.msra.mxu0 %v541
        %655 = vmatprep.subr.bf16.mxu0 0
        %656 = vmatpush1.bf16.msra.mxu0 %v542
        %657 = vmatprep.subr.bf16.mxu0 0
        %658 = vmatpush1.bf16.msra.mxu0 %v543
        %659 = vmatprep.subr.bf16.mxu0 0
        %660 = vmatpush1.bf16.msra.mxu0 %v544
        %661 = vmatprep.subr.bf16.mxu0 0
        %662 = vmatpush1.bf16.msra.mxu0 %v545
        %663 = vmatprep.subr.bf16.mxu0 0
        %664 = vmatpush1.bf16.msra.mxu0 %v546
        %665 = vmatprep.mubr.bf16.mxu0 %v323
        %666 = vmatmul.mubr.bf16.gmra.mrb[0].mxu0 %v322
        %v667 = vpop.f32.mrb[0].mxu0
        %v668 = vadd.f32 %v310, %v667
        %v669 = vpop.f32.mrb[0].mxu0
        %v670 = vpop.f32.mrb[0].mxu0
        %v671 = vpop.f32.mrb[0].mxu0
        %672 = vdwg.mxu0
        %673 = vmatprep.subr.bf16.mxu0 0
        %674 = vmatpush1.bf16.msra.mxu0 %v547
        %675 = vmatprep.subr.bf16.mxu0 0
        %676 = vmatpush1.bf16.msra.mxu0 %v548
        %677 = vmatprep.subr.bf16.mxu0 0
        %678 = vmatpush1.bf16.msra.mxu0 %v549
        %679 = vmatprep.subr.bf16.mxu0 0
        %680 = vmatpush1.bf16.msra.mxu0 %v550
        %681 = vmatprep.subr.bf16.mxu0 0
        %682 = vmatpush1.bf16.msra.mxu0 %v551
        %683 = vmatprep.subr.bf16.mxu0 0
        %684 = vmatpush1.bf16.msra.mxu0 %v552
        %685 = vmatprep.subr.bf16.mxu0 0
        %686 = vmatpush1.bf16.msra.mxu0 %v553
        %687 = vmatprep.subr.bf16.mxu0 0
        %688 = vmatpush1.bf16.msra.mxu0 %v554
        %689 = vmatprep.subr.bf16.mxu0 0
        %690 = vmatpush1.bf16.msra.mxu0 %v555
        %691 = vmatprep.subr.bf16.mxu0 0
        %692 = vmatpush1.bf16.msra.mxu0 %v556
        %693 = vmatprep.subr.bf16.mxu0 0
        %694 = vmatpush1.bf16.msra.mxu0 %v557
        %695 = vmatprep.subr.bf16.mxu0 0
        %696 = vmatpush1.bf16.msra.mxu0 %v558
        %697 = vmatprep.subr.bf16.mxu0 0
        %698 = vmatpush1.bf16.msra.mxu0 %v559
        %699 = vmatprep.subr.bf16.mxu0 0
        %700 = vmatpush1.bf16.msra.mxu0 %v560
        %701 = vmatprep.subr.bf16.mxu0 0
        %702 = vmatpush1.bf16.msra.mxu0 %v561
        %703 = vmatprep.subr.bf16.mxu0 0
        %704 = vmatpush1.bf16.msra.mxu0 %v562
        %705 = vmatprep.mubr.bf16.mxu0 %v325
        %706 = vmatmul.mubr.bf16.gmra.mrb[0].mxu0 %v324
        %v707 = vpop.f32.mrb[0].mxu0
        %v708 = vadd.f32 %v668, %v707
        %v709 = vpop.f32.mrb[0].mxu0
        %v710 = vpop.f32.mrb[0].mxu0
        %v711 = vpop.f32.mrb[0].mxu0
        %712 = vdwg.mxu0
        %713 = vmatprep.subr.bf16.mxu0 0
        %714 = vmatpush1.bf16.msra.mxu0 %v563
        %715 = vmatprep.subr.bf16.mxu0 0
        %716 = vmatpush1.bf16.msra.mxu0 %v564
        %717 = vmatprep.subr.bf16.mxu0 0
        %718 = vmatpush1.bf16.msra.mxu0 %v565
        %719 = vmatprep.subr.bf16.mxu0 0
        %720 = vmatpush1.bf16.msra.mxu0 %v566
        %721 = vmatprep.subr.bf16.mxu0 0
        %722 = vmatpush1.bf16.msra.mxu0 %v567
        %723 = vmatprep.subr.bf16.mxu0 0
        %724 = vmatpush1.bf16.msra.mxu0 %v568
        %725 = vmatprep.subr.bf16.mxu0 0
        %726 = vmatpush1.bf16.msra.mxu0 %v569
        %727 = vmatprep.subr.bf16.mxu0 0
        %728 = vmatpush1.bf16.msra.mxu0 %v570
        %729 = vmatprep.subr.bf16.mxu0 0
        %730 = vmatpush1.bf16.msra.mxu0 %v571
        %731 = vmatprep.subr.bf16.mxu0 0
        %732 = vmatpush1.bf16.msra.mxu0 %v572
        %733 = vmatprep.subr.bf16.mxu0 0
        %734 = vmatpush1.bf16.msra.mxu0 %v573
        %735 = vmatprep.subr.bf16.mxu0 0
        %736 = vmatpush1.bf16.msra.mxu0 %v574
        %737 = vmatprep.subr.bf16.mxu0 0
        %738 = vmatpush1.bf16.msra.mxu0 %v575
        %739 = vmatprep.subr.bf16.mxu0 0
        %740 = vmatpush1.bf16.msra.mxu0 %v576
        %741 = vmatprep.subr.bf16.mxu0 0
        %742 = vmatpush1.bf16.msra.mxu0 %v577
        %743 = vmatprep.subr.bf16.mxu0 0
        %744 = vmatpush1.bf16.msra.mxu0 %v578
        %745 = vmatprep.mubr.bf16.mxu0 %v327
        %746 = vmatmul.mubr.bf16.gmra.mrb[0].mxu0 %v326
        %v747 = vpop.f32.mrb[0].mxu0
        %v748 = vadd.f32 %v708, %v747
        %v749 = vpop.f32.mrb[0].mxu0
        %v750 = vpop.f32.mrb[0].mxu0
        %v751 = vpop.f32.mrb[0].mxu0
        %752 = vdwg.mxu0
        %753 = vmatprep.subr.bf16.mxu0 0
        %754 = vmatpush1.bf16.msra.mxu0 %v579
        %755 = vmatprep.subr.bf16.mxu0 0
        %756 = vmatpush1.bf16.msra.mxu0 0
        %757 = vmatprep.subr.bf16.mxu0 0
        %758 = vmatpush1.bf16.msra.mxu0 0
        %759 = vmatprep.subr.bf16.mxu0 0
        %760 = vmatpush1.bf16.msra.mxu0 0
        %761 = vmatprep.subr.bf16.mxu0 0
        %762 = vmatpush1.bf16.msra.mxu0 0
        %763 = vmatprep.subr.bf16.mxu0 0
        %764 = vmatpush1.bf16.msra.mxu0 0
        %765 = vmatprep.subr.bf16.mxu0 0
        %766 = vmatpush1.bf16.msra.mxu0 0
        %767 = vmatprep.subr.bf16.mxu0 0
        %768 = vmatpush1.bf16.msra.mxu0 0
        %769 = vmatprep.subr.bf16.mxu0 0
        %770 = vmatpush1.bf16.msra.mxu0 0
        %771 = vmatprep.subr.bf16.mxu0 0
        %772 = vmatpush1.bf16.msra.mxu0 0
        %773 = vmatprep.subr.bf16.mxu0 0
        %774 = vmatpush1.bf16.msra.mxu0 0
        %775 = vmatprep.subr.bf16.mxu0 0
        %776 = vmatpush1.bf16.msra.mxu0 0
        %777 = vmatprep.subr.bf16.mxu0 0
        %778 = vmatpush1.bf16.msra.mxu0 0
        %779 = vmatprep.subr.bf16.mxu0 0
        %780 = vmatpush1.bf16.msra.mxu0 0
        %781 = vmatprep.subr.bf16.mxu0 0
        %782 = vmatpush1.bf16.msra.mxu0 0
        %783 = vmatprep.subr.bf16.mxu0 0
        %784 = vmatpush1.bf16.msra.mxu0 0
        %785 = vmatprep.mubr.bf16.mxu0 0
        %786 = vmatmul.mubr.bf16.gmra.mrb[0].mxu0 %v631
        %v787 = vpop.f32.mrb[0].mxu0
        %v788 = vadd.f32 %v748, %v787
        %v789 = vpop.f32.mrb[0].mxu0
        %v790 = vpop.f32.mrb[0].mxu0
        %v791 = vpop.f32.mrb[0].mxu0
        %792 = vdwg.mxu0
        %v793 = vtanh.pop %v788
        %v794 = vpack.c.bf16 %v793, %v793
        %v795 = vld [vmem:[%s1 + $0xab8] sm:$0xf]
        %v796 = vld [vmem:[%s1 + $0xad4] sm:$0xf]
        %v797 = vld [vmem:[%s1 + $0xaf0] sm:$0xf]
        %v798 = vld [vmem:[%s1 + $0xb0c] sm:$0xf]
        %v799 = vld [vmem:[%s1 + $0xb28] sm:$0xf]
        %v800 = vld [vmem:[%s1 + $0xb44] sm:$0xf]
        %v801 = vld [vmem:[%s1 + $0xb60] sm:$0xf]
        %v802 = vld [vmem:[%s1 + $0xb7c] sm:$0xf]
        %v803 = vld [vmem:[%s1 + $0xb98] sm:$0xf]
        %v804 = vld [vmem:[%s1 + $0xbb4] sm:$0xf]
        %v805 = vld [vmem:[%s1 + $0xbd0] sm:$0xf]
        %v806 = vld [vmem:[%s1 + $0xbec] sm:$0xf]
        %v807 = vld [vmem:[%s1 + $0xc08] sm:$0xf]
        %v808 = vld [vmem:[%s1 + $0xc24] sm:$0xf]
        %v809 = vld [vmem:[%s1 + $0xc40] sm:$0xf]
        %v810 = vld [vmem:[%s1 + $0xc5c] sm:$0xf]
        %v811 = vld [vmem:[%s2 + $0x1] ss:$0 sm:$0xff]
        %v828 = vunpack.c.l.b16 %v795
        %v829 = vunpack.c.l.b16 %v796
        %v830 = vunpack.c.l.b16 %v797
        %v831 = vunpack.c.l.b16 %v798
        %v832 = vunpack.c.l.b16 %v799
        %v833 = vunpack.c.l.b16 %v800
        %v834 = vunpack.c.l.b16 %v801
        %v835 = vunpack.c.l.b16 %v802
        %v836 = vunpack.c.l.b16 %v803
        %v837 = vunpack.c.l.b16 %v804
        %v838 = vunpack.c.l.b16 %v805
        %v839 = vunpack.c.l.b16 %v806
        %v840 = vunpack.c.l.b16 %v807
        %v841 = vunpack.c.l.b16 %v808
        %v842 = vunpack.c.l.b16 %v809
        %v843 = vunpack.c.l.b16 %v810
        %v844 = vpack.c.b16 %v829, %v828
        %v845 = vpack.c.b16 %v831, %v830
        %v846 = vpack.c.b16 %v833, %v832
        %v847 = vpack.c.b16 %v835, %v834
        %v848 = vpack.c.b16 %v837, %v836
        %v849 = vpack.c.b16 %v839, %v838
        %v850 = vpack.c.b16 %v841, %v840
        %v851 = vpack.c.b16 %v843, %v842
        %860 = vmatprep.subr.bf16.mxu0 0
        %861 = vmatpush1.bf16.msra.mxu0 %v844
        %862 = vmatprep.subr.bf16.mxu0 0
        %863 = vmatpush1.bf16.msra.mxu0 %v845
        %864 = vmatprep.subr.bf16.mxu0 0
        %865 = vmatpush1.bf16.msra.mxu0 %v846
        %866 = vmatprep.subr.bf16.mxu0 0
        %867 = vmatpush1.bf16.msra.mxu0 %v847
        %868 = vmatprep.subr.bf16.mxu0 0
        %869 = vmatpush1.bf16.msra.mxu0 %v848
        %870 = vmatprep.subr.bf16.mxu0 0
        %871 = vmatpush1.bf16.msra.mxu0 %v849
        %872 = vmatprep.subr.bf16.mxu0 0
        %873 = vmatpush1.bf16.msra.mxu0 %v850
        %874 = vmatprep.subr.bf16.mxu0 0
        %875 = vmatpush1.bf16.msra.mxu0 %v851
        %876 = vmatprep.subr.bf16.mxu0 0
        %877 = vmatpush1.bf16.msra.mxu0 0
        %878 = vmatprep.subr.bf16.mxu0 0
        %879 = vmatpush1.bf16.msra.mxu0 0
        %880 = vmatprep.subr.bf16.mxu0 0
        %881 = vmatpush1.bf16.msra.mxu0 0
        %882 = vmatprep.subr.bf16.mxu0 0
        %883 = vmatpush1.bf16.msra.mxu0 0
        %884 = vmatprep.subr.bf16.mxu0 0
        %885 = vmatpush1.bf16.msra.mxu0 0
        %886 = vmatprep.subr.bf16.mxu0 0
        %887 = vmatpush1.bf16.msra.mxu0 0
        %888 = vmatprep.subr.bf16.mxu0 0
        %889 = vmatpush1.bf16.msra.mxu0 0
        %890 = vmatprep.subr.bf16.mxu0 0
        %891 = vmatpush1.bf16.msra.mxu0 0
        %892 = vmatprep.mubr.bf16.mxu0 0
        %893 = vmatmul.mubr.bf16.gmra.mrb[0].mxu0 %v794
        %v894 = vpop.f32.mrb[0].mxu0
        %v895 = vadd.f32 %v811, %v894
        %v896 = vpop.f32.mrb[0].mxu0
        %v897 = vpop.f32.mrb[0].mxu0
        %v898 = vpop.f32.mrb[0].mxu0
        %899 = vdwg.mxu0
        %v900 = vtanh.pop %v895
        %v901 = vpack.c.bf16 %v900, %v900
        %v902 = vld [vmem:[%s1 + $0xc78] sm:$0xf]
        %v903 = vld [vmem:[%s1 + $0xc94] sm:$0xf]
        %v904 = vld [vmem:[%s1 + $0xcb0] sm:$0xf]
        %v905 = vld [vmem:[%s1 + $0xccc] sm:$0xf]
        %v906 = vld [vmem:[%s1 + $0xce8] sm:$0xf]
        %v907 = vld [vmem:[%s1 + $0xd04] sm:$0xf]
        %v908 = vld [vmem:[%s1 + $0xd20] sm:$0xf]
        %v909 = vld [vmem:[%s1 + $0xd3c] sm:$0xf]
        %v910 = vld [vmem:[%s2 + $0x2] ss:$0 sm:$0xff]
        %v919 = vunpack.c.l.b16 %v902
        %v920 = vunpack.c.l.b16 %v903
        %v921 = vunpack.c.l.b16 %v904
        %v922 = vunpack.c.l.b16 %v905
        %v923 = vunpack.c.l.b16 %v906
        %v924 = vunpack.c.l.b16 %v907
        %v925 = vunpack.c.l.b16 %v908
        %v926 = vunpack.c.l.b16 %v909
        %v927 = vpack.c.b16 %v920, %v919
        %v928 = vpack.c.b16 %v922, %v921
        %v929 = vpack.c.b16 %v924, %v923
        %v930 = vpack.c.b16 %v926, %v925
        %vm935 = vcmask 523264
        %v937 = vsel %vm935, %v901, 0
        %939 = vmatprep.subr.bf16.mxu0 0
        %940 = vmatpush1.bf16.msra.mxu0 %v927
        %941 = vmatprep.subr.bf16.mxu0 0
        %942 = vmatpush1.bf16.msra.mxu0 %v928
        %943 = vmatprep.subr.bf16.mxu0 0
        %944 = vmatpush1.bf16.msra.mxu0 %v929
        %945 = vmatprep.subr.bf16.mxu0 0
        %946 = vmatpush1.bf16.msra.mxu0 %v930
        %947 = vmatprep.subr.bf16.mxu0 0
        %948 = vmatpush1.bf16.msra.mxu0 0
        %949 = vmatprep.subr.bf16.mxu0 0
        %950 = vmatpush1.bf16.msra.mxu0 0
        %951 = vmatprep.subr.bf16.mxu0 0
        %952 = vmatpush1.bf16.msra.mxu0 0
        %953 = vmatprep.subr.bf16.mxu0 0
        %954 = vmatpush1.bf16.msra.mxu0 0
        %955 = vmatprep.subr.bf16.mxu0 0
        %956 = vmatpush1.bf16.msra.mxu0 0
        %957 = vmatprep.subr.bf16.mxu0 0
        %958 = vmatpush1.bf16.msra.mxu0 0
        %959 = vmatprep.subr.bf16.mxu0 0
        %960 = vmatpush1.bf16.msra.mxu0 0
        %961 = vmatprep.subr.bf16.mxu0 0
        %962 = vmatpush1.bf16.msra.mxu0 0
        %963 = vmatprep.subr.bf16.mxu0 0
        %964 = vmatpush1.bf16.msra.mxu0 0
        %965 = vmatprep.subr.bf16.mxu0 0
        %966 = vmatpush1.bf16.msra.mxu0 0
        %967 = vmatprep.subr.bf16.mxu0 0
        %968 = vmatpush1.bf16.msra.mxu0 0
        %969 = vmatprep.subr.bf16.mxu0 0
        %970 = vmatpush1.bf16.msra.mxu0 0
        %971 = vmatprep.mubr.bf16.mxu0 0
        %972 = vmatmul.mubr.bf16.gmra.mrb[0].mxu0 %v937
        %v973 = vpop.f32.mrb[0].mxu0
        %v974 = vadd.f32 %v910, %v973
        %v975 = vpop.f32.mrb[0].mxu0
        %v976 = vpop.f32.mrb[0].mxu0
        %v977 = vpop.f32.mrb[0].mxu0
        %978 = vdwg.mxu0
        %v979 = vtanh.pop %v974
        %v980 = vpack.c.bf16 %v979, %v979
        %v981 = vld [vmem:[%s1 + $0xd58] sm:$0xf]
        %v982 = vld [vmem:[%s1 + $0xd74] sm:$0x3]
        %v983 = vld [vmem:[%s2 + $0x3] ss:$0 sm:$0xff]
        %v986 = vunpack.c.l.b16 %v981
        %v987 = vunpack.c.l.b16 %v982
        %v988 = vpack.c.b16 %v987, %v986
        %vm989 = vcmask 97280
        %v991 = vsel %vm989, %v980, 0
        %vm993 = vcmask 1045504
        %v995 = vsel %vm993, %v988, 0
        %997 = vmatprep.subr.bf16.mxu0 0
        %998 = vmatpush1.bf16.msra.mxu0 %v995
        %999 = vmatprep.subr.bf16.mxu0 0
        %1000 = vmatpush1.bf16.msra.mxu0 0
        %1001 = vmatprep.subr.bf16.mxu0 0
        %1002 = vmatpush1.bf16.msra.mxu0 0
        %1003 = vmatprep.subr.bf16.mxu0 0
        %1004 = vmatpush1.bf16.msra.mxu0 0
        %1005 = vmatprep.subr.bf16.mxu0 0
        %1006 = vmatpush1.bf16.msra.mxu0 0
        %1007 = vmatprep.subr.bf16.mxu0 0
        %1008 = vmatpush1.bf16.msra.mxu0 0
        %1009 = vmatprep.subr.bf16.mxu0 0
        %1010 = vmatpush1.bf16.msra.mxu0 0
        %1011 = vmatprep.subr.bf16.mxu0 0
        %1012 = vmatpush1.bf16.msra.mxu0 0
        %1013 = vmatprep.subr.bf16.mxu0 0
        %1014 = vmatpush1.bf16.msra.mxu0 0
        %1015 = vmatprep.subr.bf16.mxu0 0
        %1016 = vmatpush1.bf16.msra.mxu0 0
        %1017 = vmatprep.subr.bf16.mxu0 0
        %1018 = vmatpush1.bf16.msra.mxu0 0
        %1019 = vmatprep.subr.bf16.mxu0 0
        %1020 = vmatpush1.bf16.msra.mxu0 0
        %1021 = vmatprep.subr.bf16.mxu0 0
        %1022 = vmatpush1.bf16.msra.mxu0 0
        %1023 = vmatprep.subr.bf16.mxu0 0
        %1024 = vmatpush1.bf16.msra.mxu0 0
        %1025 = vmatprep.subr.bf16.mxu0 0
        %1026 = vmatpush1.bf16.msra.mxu0 0
        %1027 = vmatprep.subr.bf16.mxu0 0
        %1028 = vmatpush1.bf16.msra.mxu0 0
        %1029 = vmatprep.mubr.bf16.mxu0 0
        %1030 = vmatmul.mubr.bf16.gmra.mrb[0].mxu0 %v991
        %v1031 = vpop.f32.mrb[0].mxu0
        %v1032 = vadd.f32 %v983, %v1031
        %v1033 = vpop.f32.mrb[0].mxu0
        %v1034 = vpop.f32.mrb[0].mxu0
        %v1035 = vpop.f32.mrb[0].mxu0
        %1036 = vdwg.mxu0
        %vm1037 = vcmask 23552
        %1038 = vst.msk [vmem:[%s206] sm:$0xff] %vm1037, %v1032
        %v1039 = vld [vmem:[%s1 + $0xd90] sm:$0xf]
        %v1040 = vld [vmem:[%s1 + $0xdac] sm:$0x3]
        %v1041 = vld [vmem:[%s2 + $0x4] ss:$0 sm:$0xff]
        %v1044 = vunpack.c.l.b16 %v1039
        %v1045 = vunpack.c.l.b16 %v1040
        %v1046 = vpack.c.b16 %v1045, %v1044
        %v1048 = vsel %vm993, %v1046, 0
        %1050 = vmatprep.subr.bf16.mxu0 0
        %1051 = vmatpush1.bf16.msra.mxu0 %v1048
        %1052 = vmatprep.subr.bf16.mxu0 0
        %1053 = vmatpush1.bf16.msra.mxu0 0
        %1054 = vmatprep.subr.bf16.mxu0 0
        %1055 = vmatpush1.bf16.msra.mxu0 0
        %1056 = vmatprep.subr.bf16.mxu0 0
        %1057 = vmatpush1.bf16.msra.mxu0 0
        %1058 = vmatprep.subr.bf16.mxu0 0
        %1059 = vmatpush1.bf16.msra.mxu0 0
        %1060 = vmatprep.subr.bf16.mxu0 0
        %1061 = vmatpush1.bf16.msra.mxu0 0
        %1062 = vmatprep.subr.bf16.mxu0 0
        %1063 = vmatpush1.bf16.msra.mxu0 0
        %1064 = vmatprep.subr.bf16.mxu0 0
        %1065 = vmatpush1.bf16.msra.mxu0 0
        %1066 = vmatprep.subr.bf16.mxu0 0
        %1067 = vmatpush1.bf16.msra.mxu0 0
        %1068 = vmatprep.subr.bf16.mxu0 0
        %1069 = vmatpush1.bf16.msra.mxu0 0
        %1070 = vmatprep.subr.bf16.mxu0 0
        %1071 = vmatpush1.bf16.msra.mxu0 0
        %1072 = vmatprep.subr.bf16.mxu0 0
        %1073 = vmatpush1.bf16.msra.mxu0 0
        %1074 = vmatprep.subr.bf16.mxu0 0
        %1075 = vmatpush1.bf16.msra.mxu0 0
        %1076 = vmatprep.subr.bf16.mxu0 0
        %1077 = vmatpush1.bf16.msra.mxu0 0
        %1078 = vmatprep.subr.bf16.mxu0 0
        %1079 = vmatpush1.bf16.msra.mxu0 0
        %1080 = vmatprep.subr.bf16.mxu0 0
        %1081 = vmatpush1.bf16.msra.mxu0 0
        %1082 = vmatprep.mubr.bf16.mxu0 0
        %1083 = vmatmul.mubr.bf16.gmra.mrb[0].mxu0 %v991
        %v1084 = vpop.f32.mrb[0].mxu0
        %v1085 = vadd.f32 %v1041, %v1084
        %v1086 = vpop.f32.mrb[0].mxu0
        %v1087 = vpop.f32.mrb[0].mxu0
        %v1088 = vpop.f32.mrb[0].mxu0
        %1089 = vdwg.mxu0
        %v1090 = vtanh.pop %v1085
        %v1091 = vpack.c.bf16 %v1090, %v1090
        %v1092 = vld [vmem:[%s1 + $0xdc8] sm:$0xf]
        %v1093 = vld [vmem:[%s1 + $0xde4] sm:$0x3]
        %v1094 = vld [vmem:[%s2 + $0x5] ss:$0 sm:$0xff]
        %v1097 = vunpack.c.l.b16 %v1092
        %v1098 = vunpack.c.l.b16 %v1093
        %v1099 = vpack.c.b16 %v1098, %v1097
        %v1101 = vsel %vm989, %v1091, 0
        %v1104 = vsel %vm993, %v1099, 0
        %1106 = vmatprep.subr.bf16.mxu0 0
        %1107 = vmatpush1.bf16.msra.mxu0 %v1104
        %1108 = vmatprep.subr.bf16.mxu0 0
        %1109 = vmatpush1.bf16.msra.mxu0 0
        %1110 = vmatprep.subr.bf16.mxu0 0
        %1111 = vmatpush1.bf16.msra.mxu0 0
        %1112 = vmatprep.subr.bf16.mxu0 0
        %1113 = vmatpush1.bf16.msra.mxu0 0
        %1114 = vmatprep.subr.bf16.mxu0 0
        %1115 = vmatpush1.bf16.msra.mxu0 0
        %1116 = vmatprep.subr.bf16.mxu0 0
        %1117 = vmatpush1.bf16.msra.mxu0 0
        %1118 = vmatprep.subr.bf16.mxu0 0
        %1119 = vmatpush1.bf16.msra.mxu0 0
        %1120 = vmatprep.subr.bf16.mxu0 0
        %1121 = vmatpush1.bf16.msra.mxu0 0
        %1122 = vmatprep.subr.bf16.mxu0 0
        %1123 = vmatpush1.bf16.msra.mxu0 0
        %1124 = vmatprep.subr.bf16.mxu0 0
        %1125 = vmatpush1.bf16.msra.mxu0 0
        %1126 = vmatprep.subr.bf16.mxu0 0
        %1127 = vmatpush1.bf16.msra.mxu0 0
        %1128 = vmatprep.subr.bf16.mxu0 0
        %1129 = vmatpush1.bf16.msra.mxu0 0
        %1130 = vmatprep.subr.bf16.mxu0 0
        %1131 = vmatpush1.bf16.msra.mxu0 0
        %1132 = vmatprep.subr.bf16.mxu0 0
        %1133 = vmatpush1.bf16.msra.mxu0 0
        %1134 = vmatprep.subr.bf16.mxu0 0
        %1135 = vmatpush1.bf16.msra.mxu0 0
        %1136 = vmatprep.subr.bf16.mxu0 0
        %1137 = vmatpush1.bf16.msra.mxu0 0
        %1138 = vmatprep.mubr.bf16.mxu0 0
        %1139 = vmatmul.mubr.bf16.gmra.mrb[0].mxu0 %v1101
        %v1140 = vpop.f32.mrb[0].mxu0
        %v1141 = vadd.f32 %v1094, %v1140
        %v1142 = vpop.f32.mrb[0].mxu0
        %v1143 = vpop.f32.mrb[0].mxu0
        %v1144 = vpop.f32.mrb[0].mxu0
        %1145 = vdwg.mxu0
        %v1146 = vtanh.pop %v1141
        %v1147 = vpack.c.bf16 %v1146, %v1146
        %v1148 = vld [vmem:[%s1 + $0xe00] sm:$0xf]
        %v1149 = vld [vmem:[%s1 + $0xe1c] sm:$0xf]
        %v1150 = vld [vmem:[%s1 + $0xe38] sm:$0xf]
        %v1151 = vld [vmem:[%s1 + $0xe54] sm:$0xf]
        %v1152 = vld [vmem:[%s1 + $0xe70] sm:$0xf]
        %v1153 = vld [vmem:[%s1 + $0xe8c] sm:$0xf]
        %v1154 = vld [vmem:[%s1 + $0xea8] sm:$0xf]
        %v1155 = vld [vmem:[%s1 + $0xec4] sm:$0xf]
        %v1156 = vld [vmem:[%s2 + $0x6] ss:$0 sm:$0xff]
        %v1165 = vunpack.c.l.b16 %v1148
        %v1166 = vunpack.c.l.b16 %v1149
        %v1167 = vunpack.c.l.b16 %v1150
        %v1168 = vunpack.c.l.b16 %v1151
        %v1169 = vunpack.c.l.b16 %v1152
        %v1170 = vunpack.c.l.b16 %v1153
        %v1171 = vunpack.c.l.b16 %v1154
        %v1172 = vunpack.c.l.b16 %v1155
        %v1173 = vpack.c.b16 %v1166, %v1165
        %v1174 = vpack.c.b16 %v1168, %v1167
        %v1175 = vpack.c.b16 %v1170, %v1169
        %v1176 = vpack.c.b16 %v1172, %v1171
        %v1182 = vsel %vm935, %v1147, 0
        %1184 = vmatprep.subr.bf16.mxu0 0
        %1185 = vmatpush1.bf16.msra.mxu0 %v1173
        %1186 = vmatprep.subr.bf16.mxu0 0
        %1187 = vmatpush1.bf16.msra.mxu0 %v1174
        %1188 = vmatprep.subr.bf16.mxu0 0
        %1189 = vmatpush1.bf16.msra.mxu0 %v1175
        %1190 = vmatprep.subr.bf16.mxu0 0
        %1191 = vmatpush1.bf16.msra.mxu0 %v1176
        %1192 = vmatprep.subr.bf16.mxu0 0
        %1193 = vmatpush1.bf16.msra.mxu0 0
        %1194 = vmatprep.subr.bf16.mxu0 0
        %1195 = vmatpush1.bf16.msra.mxu0 0
        %1196 = vmatprep.subr.bf16.mxu0 0
        %1197 = vmatpush1.bf16.msra.mxu0 0
        %1198 = vmatprep.subr.bf16.mxu0 0
        %1199 = vmatpush1.bf16.msra.mxu0 0
        %1200 = vmatprep.subr.bf16.mxu0 0
        %1201 = vmatpush1.bf16.msra.mxu0 0
        %1202 = vmatprep.subr.bf16.mxu0 0
        %1203 = vmatpush1.bf16.msra.mxu0 0
        %1204 = vmatprep.subr.bf16.mxu0 0
        %1205 = vmatpush1.bf16.msra.mxu0 0
        %1206 = vmatprep.subr.bf16.mxu0 0
        %1207 = vmatpush1.bf16.msra.mxu0 0
        %1208 = vmatprep.subr.bf16.mxu0 0
        %1209 = vmatpush1.bf16.msra.mxu0 0
        %1210 = vmatprep.subr.bf16.mxu0 0
        %1211 = vmatpush1.bf16.msra.mxu0 0
        %1212 = vmatprep.subr.bf16.mxu0 0
        %1213 = vmatpush1.bf16.msra.mxu0 0
        %1214 = vmatprep.subr.bf16.mxu0 0
        %1215 = vmatpush1.bf16.msra.mxu0 0
        %1216 = vmatprep.mubr.bf16.mxu0 0
        %1217 = vmatmul.mubr.bf16.gmra.mrb[0].mxu0 %v1182
        %v1218 = vpop.f32.mrb[0].mxu0
        %v1219 = vadd.f32 %v1156, %v1218
        %v1220 = vpop.f32.mrb[0].mxu0
        %v1221 = vpop.f32.mrb[0].mxu0
        %v1222 = vpop.f32.mrb[0].mxu0
        %1223 = vdwg.mxu0
        %v1224 = vtanh.pop %v1219
        %v1225 = vpack.c.bf16 %v1224, %v1224
        %v1226 = vld [vmem:[%s1 + $0xee0] sm:$0xff]
        %v1227 = vld [vmem:[%s1 + $0xee8] sm:$0xff]
        %v1228 = vld [vmem:[%s1 + $0xef0] sm:$0xff]
        %v1229 = vld [vmem:[%s1 + $0xef8] sm:$0xf]
        %v1230 = vld [vmem:[%s1 + $0xefc] sm:$0xff]
        %v1231 = vld [vmem:[%s1 + $0xf04] sm:$0xff]
        %v1232 = vld [vmem:[%s1 + $0xf0c] sm:$0xff]
        %v1233 = vld [vmem:[%s1 + $0xf14] sm:$0xf]
        %v1234 = vld [vmem:[%s1 + $0xf18] sm:$0xff]
        %v1235 = vld [vmem:[%s1 + $0xf20] sm:$0xff]
        %v1236 = vld [vmem:[%s1 + $0xf28] sm:$0xff]
        %v1237 = vld [vmem:[%s1 + $0xf30] sm:$0xf]
        %v1238 = vld [vmem:[%s1 + $0xf34] sm:$0xff]
        %v1239 = vld [vmem:[%s1 + $0xf3c] sm:$0xff]
        %v1240 = vld [vmem:[%s1 + $0xf44] sm:$0xff]
        %v1241 = vld [vmem:[%s1 + $0xf4c] sm:$0xf]
        %v1242 = vld [vmem:[%s1 + $0xf50] sm:$0xff]
        %v1243 = vld [vmem:[%s1 + $0xf58] sm:$0xff]
        %v1244 = vld [vmem:[%s1 + $0xf60] sm:$0xff]
        %v1245 = vld [vmem:[%s1 + $0xf68] sm:$0xf]
        %v1246 = vld [vmem:[%s1 + $0xf6c] sm:$0xff]
        %v1247 = vld [vmem:[%s1 + $0xf74] sm:$0xff]
        %v1248 = vld [vmem:[%s1 + $0xf7c] sm:$0xff]
        %v1249 = vld [vmem:[%s1 + $0xf84] sm:$0xf]
        %v1250 = vld [vmem:[%s1 + $0xf88] sm:$0xff]
        %v1251 = vld [vmem:[%s1 + $0xf90] sm:$0xff]
        %v1252 = vld [vmem:[%s1 + $0xf98] sm:$0xff]
        %v1253 = vld [vmem:[%s1 + $0xfa0] sm:$0xf]
        %v1254 = vld [vmem:[%s1 + $0xfa4] sm:$0xff]
        %v1255 = vld [vmem:[%s1 + $0xfac] sm:$0xff]
        %v1256 = vld [vmem:[%s1 + $0xfb4] sm:$0xff]
        %v1257 = vld [vmem:[%s1 + $0xfbc] sm:$0xf]
        %v1258 = vld [vmem:[%s1 + $0xfc0] sm:$0xff]
        %v1259 = vld [vmem:[%s1 + $0xfc8] sm:$0xff]
        %v1260 = vld [vmem:[%s1 + $0xfd0] sm:$0xff]
        %v1261 = vld [vmem:[%s1 + $0xfd8] sm:$0xf]
        %v1262 = vld [vmem:[%s1 + $0xfdc] sm:$0xff]
        %v1263 = vld [vmem:[%s1 + $0xfe4] sm:$0xff]
        %v1264 = vld [vmem:[%s1 + $0xfec] sm:$0xff]
        %v1265 = vld [vmem:[%s1 + $0xff4] sm:$0xf]
        %v1266 = vld [vmem:[%s1 + $0xff8] sm:$0xff]
        %v1267 = vld [vmem:[%s1 + $0x1000] sm:$0xff]
        %v1268 = vld [vmem:[%s1 + $0x1008] sm:$0xff]
        %v1269 = vld [vmem:[%s1 + $0x1010] sm:$0xf]
        %v1270 = vld [vmem:[%s1 + $0x1014] sm:$0xff]
        %v1271 = vld [vmem:[%s1 + $0x101c] sm:$0xff]
        %v1272 = vld [vmem:[%s1 + $0x1024] sm:$0xff]
        %v1273 = vld [vmem:[%s1 + $0x102c] sm:$0xf]
        %v1274 = vld [vmem:[%s1 + $0x1030] sm:$0xff]
        %v1275 = vld [vmem:[%s1 + $0x1038] sm:$0xff]
        %v1276 = vld [vmem:[%s1 + $0x1040] sm:$0xff]
        %v1277 = vld [vmem:[%s1 + $0x1048] sm:$0xf]
        %v1278 = vld [vmem:[%s1 + $0x104c] sm:$0xff]
        %v1279 = vld [vmem:[%s1 + $0x1054] sm:$0xff]
        %v1280 = vld [vmem:[%s1 + $0x105c] sm:$0xff]
        %v1281 = vld [vmem:[%s1 + $0x1064] sm:$0xf]
        %v1282 = vld [vmem:[%s1 + $0x1068] sm:$0xff]
        %v1283 = vld [vmem:[%s1 + $0x1070] sm:$0xff]
        %v1284 = vld [vmem:[%s1 + $0x1078] sm:$0xff]
        %v1285 = vld [vmem:[%s1 + $0x1080] sm:$0xf]
        %v1286 = vld [vmem:[%s1 + $0x1084] sm:$0xff]
        %v1287 = vld [vmem:[%s1 + $0x108c] sm:$0xff]
        %v1288 = vld [vmem:[%s1 + $0x1094] sm:$0xff]
        %v1289 = vld [vmem:[%s1 + $0x109c] sm:$0xf]
        %s1290 = scalar_lea.vmem %s2, 7
        %v1291 = vld [vmem:[%s1290] ss:$8 sm:$0xf]
        %v1292 = vld [vmem:[%s1290] ss:$8 sm:$0x70]
        %v1293 = vor.u32 %v1291, %v1292
        %v1295 = vlaneseq
        %v1296 = vshrl.u32 %v1295, 7
        %v1297 = vsub.s32 0, %v1296
        %v1298 = vrot.slane %v1293, %v1297
        %v1299 = vlaneseq
        %v1300 = vshrl.u32 %v1299, 7
        %v1301 = vsub.s32 1, %v1300
        %v1302 = vrot.slane %v1293, %v1301
        %v1303 = vlaneseq
        %v1304 = vshrl.u32 %v1303, 7
        %v1305 = vsub.s32 2, %v1304
        %v1306 = vrot.slane %v1293, %v1305
        %v1307 = vlaneseq
        %v1308 = vshrl.u32 %v1307, 7
        %v1309 = vsub.s32 3, %v1308
        %v1310 = vrot.slane %v1293, %v1309
        %v1311 = vlaneseq
        %v1312 = vshrl.u32 %v1311, 7
        %v1313 = vsub.s32 4, %v1312
        %v1314 = vrot.slane %v1293, %v1313
        %v1315 = vlaneseq
        %v1316 = vshrl.u32 %v1315, 7
        %v1317 = vsub.s32 5, %v1316
        %v1318 = vrot.slane %v1293, %v1317
        %v1319 = vlaneseq
        %v1320 = vshrl.u32 %v1319, 7
        %v1321 = vsub.s32 6, %v1320
        %v1322 = vrot.slane %v1293, %v1321
        %v1394 = vunpack.c.l.b16 %v1226
        %v1395 = vunpack.c.h.b16 %v1226
        %v1396 = vunpack.c.l.b16 %v1227
        %v1397 = vunpack.c.h.b16 %v1227
        %v1398 = vunpack.c.l.b16 %v1228
        %v1399 = vunpack.c.h.b16 %v1228
        %v1400 = vunpack.c.l.b16 %v1229
        %v1401 = vunpack.c.l.b16 %v1230
        %v1402 = vunpack.c.h.b16 %v1230
        %v1403 = vunpack.c.l.b16 %v1231
        %v1404 = vunpack.c.h.b16 %v1231
        %v1405 = vunpack.c.l.b16 %v1232
        %v1406 = vunpack.c.h.b16 %v1232
        %v1407 = vunpack.c.l.b16 %v1233
        %v1408 = vunpack.c.l.b16 %v1234
        %v1409 = vunpack.c.h.b16 %v1234
        %v1410 = vunpack.c.l.b16 %v1235
        %v1411 = vunpack.c.h.b16 %v1235
        %v1412 = vunpack.c.l.b16 %v1236
        %v1413 = vunpack.c.h.b16 %v1236
        %v1414 = vunpack.c.l.b16 %v1237
        %v1415 = vunpack.c.l.b16 %v1238
        %v1416 = vunpack.c.h.b16 %v1238
        %v1417 = vunpack.c.l.b16 %v1239
        %v1418 = vunpack.c.h.b16 %v1239
        %v1419 = vunpack.c.l.b16 %v1240
        %v1420 = vunpack.c.h.b16 %v1240
        %v1421 = vunpack.c.l.b16 %v1241
        %v1422 = vunpack.c.l.b16 %v1242
        %v1423 = vunpack.c.h.b16 %v1242
        %v1424 = vunpack.c.l.b16 %v1243
        %v1425 = vunpack.c.h.b16 %v1243
        %v1426 = vunpack.c.l.b16 %v1244
        %v1427 = vunpack.c.h.b16 %v1244
        %v1428 = vunpack.c.l.b16 %v1245
        %v1429 = vunpack.c.l.b16 %v1246
        %v1430 = vunpack.c.h.b16 %v1246
        %v1431 = vunpack.c.l.b16 %v1247
        %v1432 = vunpack.c.h.b16 %v1247
        %v1433 = vunpack.c.l.b16 %v1248
        %v1434 = vunpack.c.h.b16 %v1248
        %v1435 = vunpack.c.l.b16 %v1249
        %v1436 = vunpack.c.l.b16 %v1250
        %v1437 = vunpack.c.h.b16 %v1250
        %v1438 = vunpack.c.l.b16 %v1251
        %v1439 = vunpack.c.h.b16 %v1251
        %v1440 = vunpack.c.l.b16 %v1252
        %v1441 = vunpack.c.h.b16 %v1252
        %v1442 = vunpack.c.l.b16 %v1253
        %v1443 = vunpack.c.l.b16 %v1254
        %v1444 = vunpack.c.h.b16 %v1254
        %v1445 = vunpack.c.l.b16 %v1255
        %v1446 = vunpack.c.h.b16 %v1255
        %v1447 = vunpack.c.l.b16 %v1256
        %v1448 = vunpack.c.h.b16 %v1256
        %v1449 = vunpack.c.l.b16 %v1257
        %v1450 = vunpack.c.l.b16 %v1258
        %v1451 = vunpack.c.h.b16 %v1258
        %v1452 = vunpack.c.l.b16 %v1259
        %v1453 = vunpack.c.h.b16 %v1259
        %v1454 = vunpack.c.l.b16 %v1260
        %v1455 = vunpack.c.h.b16 %v1260
        %v1456 = vunpack.c.l.b16 %v1261
        %v1457 = vunpack.c.l.b16 %v1262
        %v1458 = vunpack.c.h.b16 %v1262
        %v1459 = vunpack.c.l.b16 %v1263
        %v1460 = vunpack.c.h.b16 %v1263
        %v1461 = vunpack.c.l.b16 %v1264
        %v1462 = vunpack.c.h.b16 %v1264
        %v1463 = vunpack.c.l.b16 %v1265
        %v1464 = vunpack.c.l.b16 %v1266
        %v1465 = vunpack.c.h.b16 %v1266
        %v1466 = vunpack.c.l.b16 %v1267
        %v1467 = vunpack.c.h.b16 %v1267
        %v1468 = vunpack.c.l.b16 %v1268
        %v1469 = vunpack.c.h.b16 %v1268
        %v1470 = vunpack.c.l.b16 %v1269
        %v1471 = vunpack.c.l.b16 %v1270
        %v1472 = vunpack.c.h.b16 %v1270
        %v1473 = vunpack.c.l.b16 %v1271
        %v1474 = vunpack.c.h.b16 %v1271
        %v1475 = vunpack.c.l.b16 %v1272
        %v1476 = vunpack.c.h.b16 %v1272
        %v1477 = vunpack.c.l.b16 %v1273
        %v1478 = vunpack.c.l.b16 %v1274
        %v1479 = vunpack.c.h.b16 %v1274
        %v1480 = vunpack.c.l.b16 %v1275
        %v1481 = vunpack.c.h.b16 %v1275
        %v1482 = vunpack.c.l.b16 %v1276
        %v1483 = vunpack.c.h.b16 %v1276
        %v1484 = vunpack.c.l.b16 %v1277
        %v1485 = vunpack.c.l.b16 %v1278
        %v1486 = vunpack.c.h.b16 %v1278
        %v1487 = vunpack.c.l.b16 %v1279
        %v1488 = vunpack.c.h.b16 %v1279
        %v1489 = vunpack.c.l.b16 %v1280
        %v1490 = vunpack.c.h.b16 %v1280
        %v1491 = vunpack.c.l.b16 %v1281
        %v1492 = vunpack.c.l.b16 %v1282
        %v1493 = vunpack.c.h.b16 %v1282
        %v1494 = vunpack.c.l.b16 %v1283
        %v1495 = vunpack.c.h.b16 %v1283
        %v1496 = vunpack.c.l.b16 %v1284
        %v1497 = vunpack.c.h.b16 %v1284
        %v1498 = vunpack.c.l.b16 %v1285
        %v1499 = vunpack.c.l.b16 %v1286
        %v1500 = vunpack.c.h.b16 %v1286
        %v1501 = vunpack.c.l.b16 %v1287
        %v1502 = vunpack.c.h.b16 %v1287
        %v1503 = vunpack.c.l.b16 %v1288
        %v1504 = vunpack.c.h.b16 %v1288
        %v1505 = vunpack.c.l.b16 %v1289
        %v1506 = vpack.c.b16 %v1401, %v1394
        %v1507 = vpack.c.b16 %v1402, %v1395
        %v1508 = vpack.c.b16 %v1403, %v1396
        %v1509 = vpack.c.b16 %v1404, %v1397
        %v1510 = vpack.c.b16 %v1405, %v1398
        %v1511 = vpack.c.b16 %v1406, %v1399
        %v1512 = vpack.c.b16 %v1407, %v1400
        %v1513 = vpack.c.b16 %v1415, %v1408
        %v1514 = vpack.c.b16 %v1416, %v1409
        %v1515 = vpack.c.b16 %v1417, %v1410
        %v1516 = vpack.c.b16 %v1418, %v1411
        %v1517 = vpack.c.b16 %v1419, %v1412
        %v1518 = vpack.c.b16 %v1420, %v1413
        %v1519 = vpack.c.b16 %v1421, %v1414
        %v1520 = vpack.c.b16 %v1429, %v1422
        %v1521 = vpack.c.b16 %v1430, %v1423
        %v1522 = vpack.c.b16 %v1431, %v1424
        %v1523 = vpack.c.b16 %v1432, %v1425
        %v1524 = vpack.c.b16 %v1433, %v1426
        %v1525 = vpack.c.b16 %v1434, %v1427
        %v1526 = vpack.c.b16 %v1435, %v1428
        %v1527 = vpack.c.b16 %v1443, %v1436
        %v1528 = vpack.c.b16 %v1444, %v1437
        %v1529 = vpack.c.b16 %v1445, %v1438
        %v1530 = vpack.c.b16 %v1446, %v1439
        %v1531 = vpack.c.b16 %v1447, %v1440
        %v1532 = vpack.c.b16 %v1448, %v1441
        %v1533 = vpack.c.b16 %v1449, %v1442
        %v1534 = vpack.c.b16 %v1457, %v1450
        %v1535 = vpack.c.b16 %v1458, %v1451
        %v1536 = vpack.c.b16 %v1459, %v1452
        %v1537 = vpack.c.b16 %v1460, %v1453
        %v1538 = vpack.c.b16 %v1461, %v1454
        %v1539 = vpack.c.b16 %v1462, %v1455
        %v1540 = vpack.c.b16 %v1463, %v1456
        %v1541 = vpack.c.b16 %v1471, %v1464
        %v1542 = vpack.c.b16 %v1472, %v1465
        %v1543 = vpack.c.b16 %v1473, %v1466
        %v1544 = vpack.c.b16 %v1474, %v1467
        %v1545 = vpack.c.b16 %v1475, %v1468
        %v1546 = vpack.c.b16 %v1476, %v1469
        %v1547 = vpack.c.b16 %v1477, %v1470
        %v1548 = vpack.c.b16 %v1485, %v1478
        %v1549 = vpack.c.b16 %v1486, %v1479
        %v1550 = vpack.c.b16 %v1487, %v1480
        %v1551 = vpack.c.b16 %v1488, %v1481
        %v1552 = vpack.c.b16 %v1489, %v1482
        %v1553 = vpack.c.b16 %v1490, %v1483
        %v1554 = vpack.c.b16 %v1491, %v1484
        %v1555 = vpack.c.b16 %v1499, %v1492
        %v1556 = vpack.c.b16 %v1500, %v1493
        %v1557 = vpack.c.b16 %v1501, %v1494
        %v1558 = vpack.c.b16 %v1502, %v1495
        %v1559 = vpack.c.b16 %v1503, %v1496
        %v1560 = vpack.c.b16 %v1504, %v1497
        %v1561 = vpack.c.b16 %v1505, %v1498
        %1618 = vmatprep.subr.bf16.mxu0 %v1507
        %1619 = vmatpush1.bf16.msra.mxu0 %v1506
        %1620 = vmatprep.subr.bf16.mxu0 %v1514
        %1621 = vmatpush1.bf16.msra.mxu0 %v1513
        %1622 = vmatprep.subr.bf16.mxu0 %v1521
        %1623 = vmatpush1.bf16.msra.mxu0 %v1520
        %1624 = vmatprep.subr.bf16.mxu0 %v1528
        %1625 = vmatpush1.bf16.msra.mxu0 %v1527
        %1626 = vmatprep.subr.bf16.mxu0 %v1535
        %1627 = vmatpush1.bf16.msra.mxu0 %v1534
        %1628 = vmatprep.subr.bf16.mxu0 %v1542
        %1629 = vmatpush1.bf16.msra.mxu0 %v1541
        %1630 = vmatprep.subr.bf16.mxu0 %v1549
        %1631 = vmatpush1.bf16.msra.mxu0 %v1548
        %1632 = vmatprep.subr.bf16.mxu0 %v1556
        %1633 = vmatpush1.bf16.msra.mxu0 %v1555
        %1634 = vmatprep.subr.bf16.mxu0 0
        %1635 = vmatpush1.bf16.msra.mxu0 0
        %1636 = vmatprep.subr.bf16.mxu0 0
        %1637 = vmatpush1.bf16.msra.mxu0 0
        %1638 = vmatprep.subr.bf16.mxu0 0
        %1639 = vmatpush1.bf16.msra.mxu0 0
        %1640 = vmatprep.subr.bf16.mxu0 0
        %1641 = vmatpush1.bf16.msra.mxu0 0
        %1642 = vmatprep.subr.bf16.mxu0 0
        %1643 = vmatpush1.bf16.msra.mxu0 0
        %1644 = vmatprep.subr.bf16.mxu0 0
        %1645 = vmatpush1.bf16.msra.mxu0 0
        %1646 = vmatprep.subr.bf16.mxu0 0
        %1647 = vmatpush1.bf16.msra.mxu0 0
        %1648 = vmatprep.subr.bf16.mxu0 0
        %1649 = vmatpush1.bf16.msra.mxu0 0
        %1650 = vmatprep.mubr.bf16.mxu0 0
        %1651 = vmatmul.mubr.bf16.gmra.mrb[0].mxu0 %v1225
        %v1652 = vpop.f32.mrb[0].mxu0
        %v1653 = vadd.f32 %v1298, %v1652
        %v1654 = vpop.f32.mrb[0].mxu0
        %v1655 = vadd.f32 %v1302, %v1654
        %v1656 = vpop.f32.mrb[0].mxu0
        %v1657 = vpop.f32.mrb[0].mxu0
        %1658 = vdwg.mxu0
        %1659 = vmatprep.subr.bf16.mxu0 %v1509
        %1660 = vmatpush1.bf16.msra.mxu0 %v1508
        %1661 = vmatprep.subr.bf16.mxu0 %v1516
        %1662 = vmatpush1.bf16.msra.mxu0 %v1515
        %1663 = vmatprep.subr.bf16.mxu0 %v1523
        %1664 = vmatpush1.bf16.msra.mxu0 %v1522
        %1665 = vmatprep.subr.bf16.mxu0 %v1530
        %1666 = vmatpush1.bf16.msra.mxu0 %v1529
        %1667 = vmatprep.subr.bf16.mxu0 %v1537
        %1668 = vmatpush1.bf16.msra.mxu0 %v1536
        %1669 = vmatprep.subr.bf16.mxu0 %v1544
        %1670 = vmatpush1.bf16.msra.mxu0 %v1543
        %1671 = vmatprep.subr.bf16.mxu0 %v1551
        %1672 = vmatpush1.bf16.msra.mxu0 %v1550
        %1673 = vmatprep.subr.bf16.mxu0 %v1558
        %1674 = vmatpush1.bf16.msra.mxu0 %v1557
        %1675 = vmatprep.subr.bf16.mxu0 0
        %1676 = vmatpush1.bf16.msra.mxu0 0
        %1677 = vmatprep.subr.bf16.mxu0 0
        %1678 = vmatpush1.bf16.msra.mxu0 0
        %1679 = vmatprep.subr.bf16.mxu0 0
        %1680 = vmatpush1.bf16.msra.mxu0 0
        %1681 = vmatprep.subr.bf16.mxu0 0
        %1682 = vmatpush1.bf16.msra.mxu0 0
        %1683 = vmatprep.subr.bf16.mxu0 0
        %1684 = vmatpush1.bf16.msra.mxu0 0
        %1685 = vmatprep.subr.bf16.mxu0 0
        %1686 = vmatpush1.bf16.msra.mxu0 0
        %1687 = vmatprep.subr.bf16.mxu0 0
        %1688 = vmatpush1.bf16.msra.mxu0 0
        %1689 = vmatprep.subr.bf16.mxu0 0
        %1690 = vmatpush1.bf16.msra.mxu0 0
        %1691 = vmatprep.mubr.bf16.mxu0 0
        %1692 = vmatmul.mubr.bf16.gmra.mrb[0].mxu0 %v1225
        %v1693 = vpop.f32.mrb[0].mxu0
        %v1694 = vadd.f32 %v1306, %v1693
        %v1695 = vpop.f32.mrb[0].mxu0
        %v1696 = vadd.f32 %v1310, %v1695
        %v1697 = vpop.f32.mrb[0].mxu0
        %v1698 = vpop.f32.mrb[0].mxu0
        %1699 = vdwg.mxu0
        %1700 = vmatprep.subr.bf16.mxu0 %v1511
        %1701 = vmatpush1.bf16.msra.mxu0 %v1510
        %1702 = vmatprep.subr.bf16.mxu0 %v1518
        %1703 = vmatpush1.bf16.msra.mxu0 %v1517
        %1704 = vmatprep.subr.bf16.mxu0 %v1525
        %1705 = vmatpush1.bf16.msra.mxu0 %v1524
        %1706 = vmatprep.subr.bf16.mxu0 %v1532
        %1707 = vmatpush1.bf16.msra.mxu0 %v1531
        %1708 = vmatprep.subr.bf16.mxu0 %v1539
        %1709 = vmatpush1.bf16.msra.mxu0 %v1538
        %1710 = vmatprep.subr.bf16.mxu0 %v1546
        %1711 = vmatpush1.bf16.msra.mxu0 %v1545
        %1712 = vmatprep.subr.bf16.mxu0 %v1553
        %1713 = vmatpush1.bf16.msra.mxu0 %v1552
        %1714 = vmatprep.subr.bf16.mxu0 %v1560
        %1715 = vmatpush1.bf16.msra.mxu0 %v1559
        %1716 = vmatprep.subr.bf16.mxu0 0
        %1717 = vmatpush1.bf16.msra.mxu0 0
        %1718 = vmatprep.subr.bf16.mxu0 0
        %1719 = vmatpush1.bf16.msra.mxu0 0
        %1720 = vmatprep.subr.bf16.mxu0 0
        %1721 = vmatpush1.bf16.msra.mxu0 0
        %1722 = vmatprep.subr.bf16.mxu0 0
        %1723 = vmatpush1.bf16.msra.mxu0 0
        %1724 = vmatprep.subr.bf16.mxu0 0
        %1725 = vmatpush1.bf16.msra.mxu0 0
        %1726 = vmatprep.subr.bf16.mxu0 0
        %1727 = vmatpush1.bf16.msra.mxu0 0
        %1728 = vmatprep.subr.bf16.mxu0 0
        %1729 = vmatpush1.bf16.msra.mxu0 0
        %1730 = vmatprep.subr.bf16.mxu0 0
        %1731 = vmatpush1.bf16.msra.mxu0 0
        %1732 = vmatprep.mubr.bf16.mxu0 0
        %1733 = vmatmul.mubr.bf16.gmra.mrb[0].mxu0 %v1225
        %v1734 = vpop.f32.mrb[0].mxu0
        %v1735 = vadd.f32 %v1314, %v1734
        %v1736 = vpop.f32.mrb[0].mxu0
        %v1737 = vadd.f32 %v1318, %v1736
        %v1738 = vpop.f32.mrb[0].mxu0
        %v1739 = vpop.f32.mrb[0].mxu0
        %1740 = vdwg.mxu0
        %1741 = vmatprep.subr.bf16.mxu0 0
        %1742 = vmatpush1.bf16.msra.mxu0 %v1512
        %1743 = vmatprep.subr.bf16.mxu0 0
        %1744 = vmatpush1.bf16.msra.mxu0 %v1519
        %1745 = vmatprep.subr.bf16.mxu0 0
        %1746 = vmatpush1.bf16.msra.mxu0 %v1526
        %1747 = vmatprep.subr.bf16.mxu0 0
        %1748 = vmatpush1.bf16.msra.mxu0 %v1533
        %1749 = vmatprep.subr.bf16.mxu0 0
        %1750 = vmatpush1.bf16.msra.mxu0 %v1540
        %1751 = vmatprep.subr.bf16.mxu0 0
        %1752 = vmatpush1.bf16.msra.mxu0 %v1547
        %1753 = vmatprep.subr.bf16.mxu0 0
        %1754 = vmatpush1.bf16.msra.mxu0 %v1554
        %1755 = vmatprep.subr.bf16.mxu0 0
        %1756 = vmatpush1.bf16.msra.mxu0 %v1561
        %1757 = vmatprep.subr.bf16.mxu0 0
        %1758 = vmatpush1.bf16.msra.mxu0 0
        %1759 = vmatprep.subr.bf16.mxu0 0
        %1760 = vmatpush1.bf16.msra.mxu0 0
        %1761 = vmatprep.subr.bf16.mxu0 0
        %1762 = vmatpush1.bf16.msra.mxu0 0
        %1763 = vmatprep.subr.bf16.mxu0 0
        %1764 = vmatpush1.bf16.msra.mxu0 0
        %1765 = vmatprep.subr.bf16.mxu0 0
        %1766 = vmatpush1.bf16.msra.mxu0 0
        %1767 = vmatprep.subr.bf16.mxu0 0
        %1768 = vmatpush1.bf16.msra.mxu0 0
        %1769 = vmatprep.subr.bf16.mxu0 0
        %1770 = vmatpush1.bf16.msra.mxu0 0
        %1771 = vmatprep.subr.bf16.mxu0 0
        %1772 = vmatpush1.bf16.msra.mxu0 0
        %1773 = vmatprep.mubr.bf16.mxu0 0
        %1774 = vmatmul.mubr.bf16.gmra.mrb[0].mxu0 %v1225
        %v1775 = vpop.f32.mrb[0].mxu0
        %v1776 = vadd.f32 %v1322, %v1775
        %v1777 = vpop.f32.mrb[0].mxu0
        %v1778 = vpop.f32.mrb[0].mxu0
        %v1779 = vpop.f32.mrb[0].mxu0
        %1780 = vdwg.mxu0
        %v1781 = vmul.f32 %v1653, 0.5
        %v1782 = vmul.f32 %v1655, 0.5
        %v1783 = vmul.f32 %v1694, 0.5
        %v1784 = vmul.f32 %v1696, 0.5
        %v1785 = vmul.f32 %v1735, 0.5
        %v1786 = vmul.f32 %v1737, 0.5
        %v1787 = vmul.f32 %v1776, 0.5
        %v1788 = vtanh.pop %v1781
        %v1789 = vtanh.pop %v1782
        %v1790 = vtanh.pop %v1783
        %v1791 = vtanh.pop %v1784
        %v1792 = vtanh.pop %v1785
        %v1793 = vtanh.pop %v1786
        %v1794 = vtanh.pop %v1787
        %v1795 = vadd.f32 %v1788, 1.0
        %v1796 = vadd.f32 %v1789, 1.0
        %v1797 = vadd.f32 %v1790, 1.0
        %v1798 = vadd.f32 %v1791, 1.0
        %v1799 = vadd.f32 %v1792, 1.0
        %v1800 = vadd.f32 %v1793, 1.0
        %v1801 = vadd.f32 %v1794, 1.0
        %v1802 = vmul.f32 %v1795, 0.5
        %v1803 = vmul.f32 %v1796, 0.5
        %v1804 = vmul.f32 %v1797, 0.5
        %v1805 = vmul.f32 %v1798, 0.5
        %v1806 = vmul.f32 %v1799, 0.5
        %v1807 = vmul.f32 %v1800, 0.5
        %v1808 = vmul.f32 %v1801, 0.5
        %v1809 = vpack.c.bf16 %v1802, %v1802
        %v1810 = vpack.c.bf16 %v1803, %v1803
        %v1811 = vpack.c.bf16 %v1804, %v1804
        %v1812 = vpack.c.bf16 %v1805, %v1805
        %v1813 = vpack.c.bf16 %v1806, %v1806
        %v1814 = vpack.c.bf16 %v1807, %v1807
        %v1815 = vpack.c.bf16 %v1808, %v1808
        %v1823 = vunpack.c.l.b16 %v1809
        %v1824 = vunpack.c.l.b16 %v1810
        %v1825 = vunpack.c.l.b16 %v1811
        %v1826 = vunpack.c.l.b16 %v1812
        %v1827 = vunpack.c.l.b16 %v1813
        %v1828 = vunpack.c.l.b16 %v1814
        %v1829 = vunpack.c.l.b16 %v1815
        %v1830 = vpack.c.b16 %v1824, %v1823
        %v1831 = vpack.c.b16 %v1826, %v1825
        %v1832 = vpack.c.b16 %v1828, %v1827
        %v1833 = vpack.c.b16 %v1829, %v1829
        %1838 = vst [vmem:[%s197] sm:$0xff] %v1830
        %1839 = vst [vmem:[%s197 + $0x8] sm:$0xff] %v1831
        %1840 = vst [vmem:[%s197 + $0x10] sm:$0xff] %v1832
        %vm1841 = vcmask 125952
        %1842 = vst.msk [vmem:[%s197 + $0x18] sm:$0xf] %vm1841, %v1833
        %p1843 = scmp.lt.s32.totalorder %s19, 1
        %s1844 = scalar_select %p1843, %s19, 1
        %s1845 = smul.addr %s1844, 8
        %s1846 = scalar_lea.vmem %s3, %s1845
        %s1847 = sand.u32 %s121, 1
        %s1848 = scalar_lea.sflag [#allocation3], %s1847
        %s1849 = sand.u32 %s121, 1
        %s1850 = smul.addr %s1849, 28
        %s1851 = scalar_lea.vmem [#allocation2], %s1850
        // Predicated region
        $region33: #{autoencoder_forward.1} parent=31 // pred_check
          %p1852 = pneg %p105
        $region34: #{autoencoder_forward.1} parent=31 // pred_check_branch
          %1854 = sbr.rel (%p1852) target = $region36
        $region35: #{autoencoder_forward.1} parent=31 // pred_region
          _
        $region36: #{autoencoder_forward.1} parent=31 // pred_fallthru
          _
        // Predicated region
        $region37: #{autoencoder_forward.1} parent=31 // pred_check
          %p1855 = pneg %p131
        $region38: #{autoencoder_forward.1} parent=31 // pred_check_branch
          %1857 = sbr.rel (%p1855) target = $region40
        $region39: #{autoencoder_forward.1} parent=31 // pred_region
          %s1859 = ssub.s32 448, 448
          %1860 = vsyncadd %s1848, %s1859
          %s1861 = smul.addr %s19, 7
          %s1862 = smul.addr %s1861, 64
          %s1863 = scalar_lea.hbm %s4, %s1862
          %s1865 = sshll.u32 %s1851, 4
          %s1866 = int_to_ptr.vmem [resolvable:$true] %s1865
          %1868 = dma.vmem_to_hbm [thread:$0]  %s1866, 448, %s1863, %s1848
        $region40: #{autoencoder_forward.1} parent=31 // pred_fallthru
          _
      $region32: #{autoencoder_forward.1} parent=5 // pred_fallthru
        _
      %p1869 = scmp.le.s32.totalorder 2, %s14
      // Predicated region
      $region41: #{autoencoder_forward.1} parent=5 // pred_check
        %p1870 = pneg %p1869
      $region42: #{autoencoder_forward.1} parent=5 // pred_check_branch
        %1872 = sbr.rel (%p1870) target = $region44
      $region43: #{autoencoder_forward.1} parent=5 // pred_region
        %s1873 = ssub.s32 %s14, 2
        // Predicated region
        $region45: #{autoencoder_forward.1} parent=43 // pred_check
          %p1874 = pneg %p111
        $region46: #{autoencoder_forward.1} parent=43 // pred_check_branch
          %1876 = sbr.rel (%p1874) target = $region48
        $region47: #{autoencoder_forward.1} parent=43 // pred_region
          %p1877 = scmp.lt.s32.totalorder %s20, 1
          %s1878 = scalar_select %p1877, %s20, 1
          %s1879 = smul.addr %s1878, 8
          %s1880 = scalar_lea.vmem %s3, %s1879
        $region48: #{autoencoder_forward.1} parent=43 // pred_fallthru
          _
        // Predicated region
        $region49: #{autoencoder_forward.1} parent=43 // pred_check
          %p1881 = pneg %p137
        $region50: #{autoencoder_forward.1} parent=43 // pred_check_branch
          %1883 = sbr.rel (%p1881) target = $region52
        $region51: #{autoencoder_forward.1} parent=43 // pred_region
          %s1884 = sand.u32 %s122, 1
          %s1885 = scalar_lea.sflag [#allocation3], %s1884
          %s1886 = sand.u32 %s122, 1
          %s1887 = smul.addr %s1886, 28
          %s1888 = scalar_lea.vmem [#allocation2], %s1887
          %1889 = dma.done %s1885, 448
        $region52: #{autoencoder_forward.1} parent=43 // pred_fallthru
          _
      $region44: #{autoencoder_forward.1} parent=5 // pred_fallthru
        _
    $region6: #{autoencoder_forward.1} parent=1 // loop_footer
      %s18 = sadd.s32 1, %s14
    $region7: #{autoencoder_forward.1} parent=1 // loop_footer_branch
      %13 = sbr.rel target = $region3
    $region8: #{autoencoder_forward.1} parent=1 // loop_exit
      _
    %1890 = vsyncpa [#allocation3], 1
    %s1891 = scalar_lea.sflag [#allocation3], 1
    %1892 = vsyncpa %s1891, 1

</llo_original>
